<compile_context>
chip_gen: v6e
topology: v6e:2x2x1
jax: 0.10.0
libtpu: 0.0.40
codegen_flags: <defaults>
</compile_context>

<pallas_src>
import itertools
import numpy as np
import jax
import jax.numpy as jnp
from jax.experimental import pallas as pl
from jax.experimental.pallas import tpu as pltpu

K = 2
MODE = "invariant"


# ---------------------------------------------------------------------------
# Equality-pattern / bias-basis generation (host-side, numpy) — direct port of
# the PyTorch reference helpers.
# ---------------------------------------------------------------------------
def partition(set_):
    if not set_:
        return [[]]
    a = set_.pop()
    rec_sets = partition(set_)
    output = []
    for rec_set in rec_sets:
        rec_set_copy = rec_set.copy()
        rec_set_copy.append([a])
        output.append(rec_set_copy)
        for s in rec_set:
            rec_set_copy = rec_set.copy()
            s_copy = s.copy()
            rec_set_copy.remove(s)
            s_copy.append(a)
            rec_set_copy.append(s_copy)
            output.append(rec_set_copy)
    return output


def generate_pattern(k):
    sets = partition(list(range(k)))
    patterns = np.zeros((len(sets), k), dtype=np.int64)
    for p_ind, pattern in enumerate(sets):
        for i_ind, ind_set in enumerate(pattern):
            for i in ind_set:
                patterns[p_ind, i] = i_ind
    return patterns


def generate_bias(n, k):
    """n^k x b(k) basis of equality-pattern indicator tensors."""
    pattern = generate_pattern(k)
    num_p = len(pattern)
    out = np.zeros((n,) * k + (num_p,), dtype=np.float32)
    for p_ind in range(num_p):
        for ind in itertools.product(range(n), repeat=k):
            add_one = True
            for j in range(k):
                for l in range(j):
                    add_one = add_one and (
                        (ind[j] == ind[l]) == (pattern[p_ind, j] == pattern[p_ind, l])
                    )
            if add_one:
                out[ind + (p_ind,)] = 1.0
    return out.reshape(n ** k, num_p)


# ---------------------------------------------------------------------------
# Pallas kernel (one grid step = one tile of TS samples)
#   x_ref    : (Baug, N2*TS)  transposed sample tile, lane index = n*TS + a,
#              basis axis augmented with the equi_bias columns
#   w_ref    : (s, Baug)      [equiweight ; equibias]^T       (resident VMEM)
#   wout_ref : (N2, s)        equi_bias @ outputweight        (resident VMEM)
#   bias_ref : (1, 1)         scalar bias                     (SMEM)
#   o_ref    : (1, TS)        per-sample output tile (lane-dense)
# ---------------------------------------------------------------------------
def gnn_invariant_kernel(x_ref, w_ref, wout_ref, bias_ref, o_ref):
    ts = o_ref.shape[1]
    n2 = wout_ref.shape[0]

    # term1 + term2 in a single MXU matmul (term2 folded via the augmented
    # basis rows of x).  Output (s, N2*ts) is fully lane-dense.
    pre = jnp.dot(w_ref[...], x_ref[...], preferred_element_type=jnp.float32)

    # sigmoid via a single EUP transcendental: sigmoid(x) = 0.5*tanh(0.5x)+0.5
    temp = 0.5 * jnp.tanh(0.5 * pre) + 0.5

    # Invariant readout: out[a] = sum_{n,c} temp[c, n*ts+a] * wout[n, c].
    # Each node n owns a whole-vreg 128-aligned lane block -> 16 tiny MXU
    # mat-vecs + lane-dense vreg adds.  No reshape, no masked XLU reduce,
    # no broadcasted weight tile.
    wout = wout_ref[...]
    acc = jnp.zeros((1, ts), jnp.float32)
    for n in range(n2):                      # static, N2 = n^k (16 here)
        blk = temp[:, n * ts:(n + 1) * ts]   # (s, ts), aligned lane slice
        acc = acc + jnp.dot(wout[n:n + 1, :], blk,
                            preferred_element_type=jnp.float32)

    o_ref[...] = (acc + bias_ref[0, 0]).astype(o_ref.dtype)


def gnn_forward(x, equi_bias, equiweight, equibias, outputweight, bias,
                *, sample_tile=None):
    S, N2, Be = x.shape
    Bk, s = equibias.shape
    Baug = Be + Bk

    # Sample tile: multiple of 128 (whole-vreg node blocks, unmasked lane
    # stores); large batches prefer >= 2 grid steps so the "parallel" axis
    # can shard across both v7x TensorCores; capped at 512 to keep the
    # double-buffered x tile ~1.6 MB (well under v5e's 16 MiB scoped VMEM
    # default and v7x's 64 MiB physical VMEM).
    if sample_tile is not None:
        ts = max(128, (sample_tile // 128) * 128)
    elif S <= 256:
        ts = 128
    else:
        ts = min(512, 128 * max(1, (S // 2) // 128))
    num_tiles = pl.cdiv(S, ts)
    S_pad = num_tiles * ts

    xf = x.astype(jnp.float32)
    if S_pad != S:
        xf = jnp.pad(xf, ((0, S_pad - S), (0, 0), (0, 0)))

    # Fold term2 = equi_bias @ equibias into the main matmul: augment the
    # basis axis of x with the equi_bias columns and stack equibias under
    # equiweight.  (one-time XLA prep, free per grid step)
    eb = jnp.broadcast_to(equi_bias[None].astype(jnp.float32), (S_pad, N2, Bk))
    x_aug = jnp.concatenate([xf, eb], axis=2)                   # (S_pad, N2, Baug)

    # Transposed, lane-dense layout: column index (within tile i) = n*ts + a.
    x_t = (x_aug.reshape(num_tiles, ts, N2, Baug)
                .transpose(3, 0, 2, 1)
                .reshape(Baug, num_tiles * N2 * ts))            # (Baug, tiles*N2*ts)

    w_aug_t = jnp.concatenate([equiweight, equibias], axis=0).T  # (s, Baug)
    wout2d = jnp.dot(equi_bias, outputweight)                    # (N2, s) ~ 2 KB
    bias_smem = bias.reshape(1, 1).astype(jnp.float32)

    vmem = pltpu.MemorySpace.VMEM
    smem = pltpu.MemorySpace.SMEM

    flops = (2 * S_pad * N2 * Baug * s        # main matmul
             + 2 * S_pad * N2 * s             # readout mat-vecs
             + 3 * S_pad * N2 * s)            # elementwise sigmoid math
    bytes_accessed = 4 * (x_t.size + w_aug_t.size + wout2d.size + S_pad + 1)

    out = pl.pallas_call(
        gnn_invariant_kernel,
        out_shape=jax.ShapeDtypeStruct((1, S_pad), jnp.float32),
        grid=(num_tiles,),
        in_specs=[
            pl.BlockSpec((Baug, ts * N2), lambda i: (0, i)),   # x sample tile
            pl.BlockSpec(memory_space=vmem),                   # W_aug^T (resident)
            pl.BlockSpec(memory_space=vmem),                   # eqb@Wout (resident)
            pl.BlockSpec(memory_space=smem),                   # scalar bias
        ],
        out_specs=pl.BlockSpec((1, ts), lambda i: (0, i)),
        compiler_params=pltpu.CompilerParams(
            dimension_semantics=("parallel",)),
        cost_estimate=pl.CostEstimate(
            flops=flops,
            transcendentals=S_pad * N2 * s,
            bytes_accessed=bytes_accessed),
    )(x_t, w_aug_t, wout2d, bias_smem)

    # Padded tail samples hold finite garbage and are sliced off here.
    return out[0, :S]


# TODO(synk): 'equivariant' mode branch (equi_output contraction) is not
# exercised here since the module is instantiated with mode='invariant'.


if __name__ == "__main__":
    k = K
    n_sample, n, s, init_n = 8, 4, 32, 10

    Be = len(generate_pattern(2 + k))   # b(4) = 15
    Bk = len(generate_pattern(k))       # b(2) = 2

    key = jax.random.PRNGKey(0)
    k1, k2, k3, k4 = jax.random.split(key, 4)

    # Deterministic parameter init, mirroring the PyTorch __init__.
    equiweight = (jax.random.normal(k1, (Be, s), jnp.float32)
                  * np.sqrt(1.0 / (s * init_n ** k * Be)))
    equibias = jnp.zeros((Bk, s), jnp.float32)
    outputweight = (jax.random.normal(k2, (Bk, s), jnp.float32)
                    * np.sqrt(1.0 / (s * init_n ** k * Bk)))
    bias = jnp.zeros((1,), jnp.float32)

    equi_bias = jnp.asarray(generate_bias(n, k))            # (n^k, Bk)

    def reference(xin):
        term1 = jnp.einsum("snb,bc->snc", xin, equiweight)
        term2 = jnp.einsum("nb,bc->nc", equi_bias, equibias)
        temp = jax.nn.sigmoid(term1 + term2[None])
        return jnp.einsum("snc,nb,bc->s", temp, equi_bias, outputweight) + bias[0]

    # Small mini-batch: single (padded) 128-sample tile.
    x = jax.random.normal(k3, (n_sample, n ** k, Be), jnp.float32)
    out = jax.block_until_ready(
        gnn_forward(x, equi_bias, equiweight, equibias, outputweight, bias))
    assert out.shape == (n_sample,)
    assert jnp.allclose(out, reference(x), atol=1e-4, rtol=1e-5), (out, reference(x))

    # Larger batch: exercises the gridded, 2-tile parallel path.
    x_big = jax.random.normal(k4, (256, n ** k, Be), jnp.float32)
    out_big = jax.block_until_ready(
        gnn_forward(x_big, equi_bias, equiweight, equibias, outputweight, bias))
    assert out_big.shape == (256,)
    assert jnp.allclose(out_big, reference(x_big), atol=1e-4, rtol=1e-5)

    print("KERNEL_OK")
</pallas_src>

<mosaic_0001>
module attributes {stable_mosaic.version = 11 : i64} {
  func.func @gnn_invariant_kernel(%arg0: i32, %arg1: memref<17x2048xf32, #tpu.memory_space<vmem>>, %arg2: memref<32x17xf32, #tpu.memory_space<vmem>>, %arg3: memref<16x32xf32, #tpu.memory_space<vmem>>, %arg4: memref<1x1xf32, #tpu.memory_space<smem>>, %arg5: memref<1x128xf32, #tpu.memory_space<vmem>>) attributes {dimension_semantics = [#tpu.dimension_semantics<parallel>], iteration_bounds = array<i64: 1>, scalar_prefetch = 0 : i64, scratch_operands = 0 : i64, tpu.core_type = #tpu.core_type<tc>, window_params = [{transform_indices = @transform_0, window_bounds = array<i64: 17, 2048>}, {pipeline_mode = #tpu.pipeline_mode<synchronous>, transform_indices = @transform_1, window_bounds = array<i64: 32, 17>}, {pipeline_mode = #tpu.pipeline_mode<synchronous>, transform_indices = @transform_2, window_bounds = array<i64: 16, 32>}, {transform_indices = @transform_3, window_bounds = array<i64: 1, 1>}, {transform_indices = @transform_4, window_bounds = array<i64: 1, 128>}]} {
    %c0 = arith.constant 0 : index
    %c0_0 = arith.constant 0 : index
    %0 = vector.load %arg2[%c0, %c0_0] : memref<32x17xf32, #tpu.memory_space<vmem>>, vector<32x17xf32>
    %c0_1 = arith.constant 0 : index
    %c0_2 = arith.constant 0 : index
    %1 = vector.load %arg1[%c0_1, %c0_2] : memref<17x2048xf32, #tpu.memory_space<vmem>>, vector<17x2048xf32>
    %cst = arith.constant dense<0.000000e+00> : vector<32x2048xf32>
    %2 = tpu.matmul %0, %1, %cst {dimension_numbers = #tpu.dot_dimension_numbers<[1], [0], [0], [1], [0, 0, 1, 1], [], []>} : vector<32x17xf32>, vector<17x2048xf32>, vector<32x2048xf32> -> vector<32x2048xf32>
    %cst_3 = arith.constant 5.000000e-01 : f32
    %3 = vector.broadcast %cst_3 : f32 to vector<32x2048xf32>
    %4 = arith.mulf %3, %2 : vector<32x2048xf32>
    %5 = math.tanh %4 : vector<32x2048xf32>
    %cst_4 = arith.constant 5.000000e-01 : f32
    %6 = vector.broadcast %cst_4 : f32 to vector<32x2048xf32>
    %7 = arith.mulf %6, %5 : vector<32x2048xf32>
    %cst_5 = arith.constant 5.000000e-01 : f32
    %8 = vector.broadcast %cst_5 : f32 to vector<32x2048xf32>
    %9 = arith.addf %7, %8 : vector<32x2048xf32>
    %c0_6 = arith.constant 0 : index
    %c0_7 = arith.constant 0 : index
    %10 = vector.load %arg3[%c0_6, %c0_7] : memref<16x32xf32, #tpu.memory_space<vmem>>, vector<16x32xf32>
    %cst_8 = arith.constant 0.000000e+00 : f32
    %11 = vector.broadcast %cst_8 : f32 to vector<1x128xf32>
    %12 = vector.extract_strided_slice %9 {offsets = [0, 0], sizes = [32, 128], strides = [1, 1]} : vector<32x2048xf32> to vector<32x128xf32>
    %13 = vector.extract_strided_slice %10 {offsets = [0, 0], sizes = [1, 32], strides = [1, 1]} : vector<16x32xf32> to vector<1x32xf32>
    %cst_9 = arith.constant dense<0.000000e+00> : vector<1x128xf32>
    %14 = tpu.matmul %13, %12, %cst_9 {dimension_numbers = #tpu.dot_dimension_numbers<[1], [0], [0], [1], [0, 0, 1, 1], [], []>} : vector<1x32xf32>, vector<32x128xf32>, vector<1x128xf32> -> vector<1x128xf32>
    %15 = arith.addf %11, %14 : vector<1x128xf32>
    %16 = vector.extract_strided_slice %9 {offsets = [0, 128], sizes = [32, 128], strides = [1, 1]} : vector<32x2048xf32> to vector<32x128xf32>
    %17 = vector.extract_strided_slice %10 {offsets = [1, 0], sizes = [1, 32], strides = [1, 1]} : vector<16x32xf32> to vector<1x32xf32>
    %cst_10 = arith.constant dense<0.000000e+00> : vector<1x128xf32>
    %18 = tpu.matmul %17, %16, %cst_10 {dimension_numbers = #tpu.dot_dimension_numbers<[1], [0], [0], [1], [0, 0, 1, 1], [], []>} : vector<1x32xf32>, vector<32x128xf32>, vector<1x128xf32> -> vector<1x128xf32>
    %19 = arith.addf %15, %18 : vector<1x128xf32>
    %20 = vector.extract_strided_slice %9 {offsets = [0, 256], sizes = [32, 128], strides = [1, 1]} : vector<32x2048xf32> to vector<32x128xf32>
    %21 = vector.extract_strided_slice %10 {offsets = [2, 0], sizes = [1, 32], strides = [1, 1]} : vector<16x32xf32> to vector<1x32xf32>
    %cst_11 = arith.constant dense<0.000000e+00> : vector<1x128xf32>
    %22 = tpu.matmul %21, %20, %cst_11 {dimension_numbers = #tpu.dot_dimension_numbers<[1], [0], [0], [1], [0, 0, 1, 1], [], []>} : vector<1x32xf32>, vector<32x128xf32>, vector<1x128xf32> -> vector<1x128xf32>
    %23 = arith.addf %19, %22 : vector<1x128xf32>
    %24 = vector.extract_strided_slice %9 {offsets = [0, 384], sizes = [32, 128], strides = [1, 1]} : vector<32x2048xf32> to vector<32x128xf32>
    %25 = vector.extract_strided_slice %10 {offsets = [3, 0], sizes = [1, 32], strides = [1, 1]} : vector<16x32xf32> to vector<1x32xf32>
    %cst_12 = arith.constant dense<0.000000e+00> : vector<1x128xf32>
    %26 = tpu.matmul %25, %24, %cst_12 {dimension_numbers = #tpu.dot_dimension_numbers<[1], [0], [0], [1], [0, 0, 1, 1], [], []>} : vector<1x32xf32>, vector<32x128xf32>, vector<1x128xf32> -> vector<1x128xf32>
    %27 = arith.addf %23, %26 : vector<1x128xf32>
    %28 = vector.extract_strided_slice %9 {offsets = [0, 512], sizes = [32, 128], strides = [1, 1]} : vector<32x2048xf32> to vector<32x128xf32>
    %29 = vector.extract_strided_slice %10 {offsets = [4, 0], sizes = [1, 32], strides = [1, 1]} : vector<16x32xf32> to vector<1x32xf32>
    %cst_13 = arith.constant dense<0.000000e+00> : vector<1x128xf32>
    %30 = tpu.matmul %29, %28, %cst_13 {dimension_numbers = #tpu.dot_dimension_numbers<[1], [0], [0], [1], [0, 0, 1, 1], [], []>} : vector<1x32xf32>, vector<32x128xf32>, vector<1x128xf32> -> vector<1x128xf32>
    %31 = arith.addf %27, %30 : vector<1x128xf32>
    %32 = vector.extract_strided_slice %9 {offsets = [0, 640], sizes = [32, 128], strides = [1, 1]} : vector<32x2048xf32> to vector<32x128xf32>
    %33 = vector.extract_strided_slice %10 {offsets = [5, 0], sizes = [1, 32], strides = [1, 1]} : vector<16x32xf32> to vector<1x32xf32>
    %cst_14 = arith.constant dense<0.000000e+00> : vector<1x128xf32>
    %34 = tpu.matmul %33, %32, %cst_14 {dimension_numbers = #tpu.dot_dimension_numbers<[1], [0], [0], [1], [0, 0, 1, 1], [], []>} : vector<1x32xf32>, vector<32x128xf32>, vector<1x128xf32> -> vector<1x128xf32>
    %35 = arith.addf %31, %34 : vector<1x128xf32>
    %36 = vector.extract_strided_slice %9 {offsets = [0, 768], sizes = [32, 128], strides = [1, 1]} : vector<32x2048xf32> to vector<32x128xf32>
    %37 = vector.extract_strided_slice %10 {offsets = [6, 0], sizes = [1, 32], strides = [1, 1]} : vector<16x32xf32> to vector<1x32xf32>
    %cst_15 = arith.constant dense<0.000000e+00> : vector<1x128xf32>
    %38 = tpu.matmul %37, %36, %cst_15 {dimension_numbers = #tpu.dot_dimension_numbers<[1], [0], [0], [1], [0, 0, 1, 1], [], []>} : vector<1x32xf32>, vector<32x128xf32>, vector<1x128xf32> -> vector<1x128xf32>
    %39 = arith.addf %35, %38 : vector<1x128xf32>
    %40 = vector.extract_strided_slice %9 {offsets = [0, 896], sizes = [32, 128], strides = [1, 1]} : vector<32x2048xf32> to vector<32x128xf32>
    %41 = vector.extract_strided_slice %10 {offsets = [7, 0], sizes = [1, 32], strides = [1, 1]} : vector<16x32xf32> to vector<1x32xf32>
    %cst_16 = arith.constant dense<0.000000e+00> : vector<1x128xf32>
    %42 = tpu.matmul %41, %40, %cst_16 {dimension_numbers = #tpu.dot_dimension_numbers<[1], [0], [0], [1], [0, 0, 1, 1], [], []>} : vector<1x32xf32>, vector<32x128xf32>, vector<1x128xf32> -> vector<1x128xf32>
    %43 = arith.addf %39, %42 : vector<1x128xf32>
    %44 = vector.extract_strided_slice %9 {offsets = [0, 1024], sizes = [32, 128], strides = [1, 1]} : vector<32x2048xf32> to vector<32x128xf32>
    %45 = vector.extract_strided_slice %10 {offsets = [8, 0], sizes = [1, 32], strides = [1, 1]} : vector<16x32xf32> to vector<1x32xf32>
    %cst_17 = arith.constant dense<0.000000e+00> : vector<1x128xf32>
    %46 = tpu.matmul %45, %44, %cst_17 {dimension_numbers = #tpu.dot_dimension_numbers<[1], [0], [0], [1], [0, 0, 1, 1], [], []>} : vector<1x32xf32>, vector<32x128xf32>, vector<1x128xf32> -> vector<1x128xf32>
    %47 = arith.addf %43, %46 : vector<1x128xf32>
    %48 = vector.extract_strided_slice %9 {offsets = [0, 1152], sizes = [32, 128], strides = [1, 1]} : vector<32x2048xf32> to vector<32x128xf32>
    %49 = vector.extract_strided_slice %10 {offsets = [9, 0], sizes = [1, 32], strides = [1, 1]} : vector<16x32xf32> to vector<1x32xf32>
    %cst_18 = arith.constant dense<0.000000e+00> : vector<1x128xf32>
    %50 = tpu.matmul %49, %48, %cst_18 {dimension_numbers = #tpu.dot_dimension_numbers<[1], [0], [0], [1], [0, 0, 1, 1], [], []>} : vector<1x32xf32>, vector<32x128xf32>, vector<1x128xf32> -> vector<1x128xf32>
    %51 = arith.addf %47, %50 : vector<1x128xf32>
    %52 = vector.extract_strided_slice %9 {offsets = [0, 1280], sizes = [32, 128], strides = [1, 1]} : vector<32x2048xf32> to vector<32x128xf32>
    %53 = vector.extract_strided_slice %10 {offsets = [10, 0], sizes = [1, 32], strides = [1, 1]} : vector<16x32xf32> to vector<1x32xf32>
    %cst_19 = arith.constant dense<0.000000e+00> : vector<1x128xf32>
    %54 = tpu.matmul %53, %52, %cst_19 {dimension_numbers = #tpu.dot_dimension_numbers<[1], [0], [0], [1], [0, 0, 1, 1], [], []>} : vector<1x32xf32>, vector<32x128xf32>, vector<1x128xf32> -> vector<1x128xf32>
    %55 = arith.addf %51, %54 : vector<1x128xf32>
    %56 = vector.extract_strided_slice %9 {offsets = [0, 1408], sizes = [32, 128], strides = [1, 1]} : vector<32x2048xf32> to vector<32x128xf32>
    %57 = vector.extract_strided_slice %10 {offsets = [11, 0], sizes = [1, 32], strides = [1, 1]} : vector<16x32xf32> to vector<1x32xf32>
    %cst_20 = arith.constant dense<0.000000e+00> : vector<1x128xf32>
    %58 = tpu.matmul %57, %56, %cst_20 {dimension_numbers = #tpu.dot_dimension_numbers<[1], [0], [0], [1], [0, 0, 1, 1], [], []>} : vector<1x32xf32>, vector<32x128xf32>, vector<1x128xf32> -> vector<1x128xf32>
    %59 = arith.addf %55, %58 : vector<1x128xf32>
    %60 = vector.extract_strided_slice %9 {offsets = [0, 1536], sizes = [32, 128], strides = [1, 1]} : vector<32x2048xf32> to vector<32x128xf32>
    %61 = vector.extract_strided_slice %10 {offsets = [12, 0], sizes = [1, 32], strides = [1, 1]} : vector<16x32xf32> to vector<1x32xf32>
    %cst_21 = arith.constant dense<0.000000e+00> : vector<1x128xf32>
    %62 = tpu.matmul %61, %60, %cst_21 {dimension_numbers = #tpu.dot_dimension_numbers<[1], [0], [0], [1], [0, 0, 1, 1], [], []>} : vector<1x32xf32>, vector<32x128xf32>, vector<1x128xf32> -> vector<1x128xf32>
    %63 = arith.addf %59, %62 : vector<1x128xf32>
    %64 = vector.extract_strided_slice %9 {offsets = [0, 1664], sizes = [32, 128], strides = [1, 1]} : vector<32x2048xf32> to vector<32x128xf32>
    %65 = vector.extract_strided_slice %10 {offsets = [13, 0], sizes = [1, 32], strides = [1, 1]} : vector<16x32xf32> to vector<1x32xf32>
    %cst_22 = arith.constant dense<0.000000e+00> : vector<1x128xf32>
    %66 = tpu.matmul %65, %64, %cst_22 {dimension_numbers = #tpu.dot_dimension_numbers<[1], [0], [0], [1], [0, 0, 1, 1], [], []>} : vector<1x32xf32>, vector<32x128xf32>, vector<1x128xf32> -> vector<1x128xf32>
    %67 = arith.addf %63, %66 : vector<1x128xf32>
    %68 = vector.extract_strided_slice %9 {offsets = [0, 1792], sizes = [32, 128], strides = [1, 1]} : vector<32x2048xf32> to vector<32x128xf32>
    %69 = vector.extract_strided_slice %10 {offsets = [14, 0], sizes = [1, 32], strides = [1, 1]} : vector<16x32xf32> to vector<1x32xf32>
    %cst_23 = arith.constant dense<0.000000e+00> : vector<1x128xf32>
    %70 = tpu.matmul %69, %68, %cst_23 {dimension_numbers = #tpu.dot_dimension_numbers<[1], [0], [0], [1], [0, 0, 1, 1], [], []>} : vector<1x32xf32>, vector<32x128xf32>, vector<1x128xf32> -> vector<1x128xf32>
    %71 = arith.addf %67, %70 : vector<1x128xf32>
    %72 = vector.extract_strided_slice %9 {offsets = [0, 1920], sizes = [32, 128], strides = [1, 1]} : vector<32x2048xf32> to vector<32x128xf32>
    %73 = vector.extract_strided_slice %10 {offsets = [15, 0], sizes = [1, 32], strides = [1, 1]} : vector<16x32xf32> to vector<1x32xf32>
    %cst_24 = arith.constant dense<0.000000e+00> : vector<1x128xf32>
    %74 = tpu.matmul %73, %72, %cst_24 {dimension_numbers = #tpu.dot_dimension_numbers<[1], [0], [0], [1], [0, 0, 1, 1], [], []>} : vector<1x32xf32>, vector<32x128xf32>, vector<1x128xf32> -> vector<1x128xf32>
    %75 = arith.addf %71, %74 : vector<1x128xf32>
    %c0_25 = arith.constant 0 : index
    %c0_26 = arith.constant 0 : index
    %76 = memref.load %arg4[%c0_25, %c0_26] : memref<1x1xf32, #tpu.memory_space<smem>>
    %77 = vector.broadcast %76 : f32 to vector<1x128xf32>
    %78 = arith.addf %75, %77 : vector<1x128xf32>
    %c0_27 = arith.constant 0 : index
    %c0_28 = arith.constant 0 : index
    %79 = vector.load %arg5[%c0_27, %c0_28] : memref<1x128xf32, #tpu.memory_space<vmem>>, vector<1x128xf32>
    tpu.vector_store %arg5[%c0_27, %c0_28], %78 {strides = array<i32>} : memref<1x128xf32, #tpu.memory_space<vmem>>, vector<1x128xf32>,
    return
  }
  func.func @transform_0(%arg0: i32) -> (i32, i32) {
    %c0_i32 = arith.constant 0 : i32
    %c0_i32_0 = arith.constant 0 : i32
    return %c0_i32, %arg0 : i32, i32
  }
  func.func @transform_1(%arg0: i32) -> (i32, i32) {
    %c0_i32 = arith.constant 0 : i32
    %c0_i32_0 = arith.constant 0 : i32
    %c0_i32_1 = arith.constant 0 : i32
    return %c0_i32, %c0_i32_0 : i32, i32
  }
  func.func @transform_2(%arg0: i32) -> (i32, i32) {
    %c0_i32 = arith.constant 0 : i32
    %c0_i32_0 = arith.constant 0 : i32
    %c0_i32_1 = arith.constant 0 : i32
    return %c0_i32, %c0_i32_0 : i32, i32
  }
  func.func @transform_3(%arg0: i32) -> (i32, i32) {
    %c0_i32 = arith.constant 0 : i32
    %c0_i32_0 = arith.constant 0 : i32
    %c0_i32_1 = arith.constant 0 : i32
    return %c0_i32, %c0_i32_0 : i32, i32
  }
  func.func @transform_4(%arg0: i32) -> (i32, i32) {
    %c0_i32 = arith.constant 0 : i32
    %c0_i32_0 = arith.constant 0 : i32
    return %c0_i32, %arg0 : i32, i32
  }
}

</mosaic_0001>

<llo_original>
// kernel: tpu_custom_call.1
$region0: #{tpu_custom_call.1}
  #allocation0 [shape = 'u32[]', space=smem, size = 0x4, offset = 0x4, fixed_abs, tag = 'smem constant byte address 0x4 - core index']
  #allocation1 [shape = 'u32[144,128]{1,0:T(1,128)}', space=vmem, size = 0x12000, scoped, tag = 'internal scratch']
  #allocation2 [shape = 'f32[1,1]{1,0:T(1,128)S(6)}', space=smem, size = 0x200, scoped, tag = 'scoped memory for tpu_custom_call.1']
  %s0 = inlined_call_operand.hbm [shape: f32[17,2048], index: 0, kind: input, shape index: {}]
  %s1 = inlined_call_operand.vmem [shape: f32[32,17], index: 1, kind: input, shape index: {}]
  %s2 = inlined_call_operand.vmem [shape: f32[16,32], index: 2, kind: input, shape index: {}]
  %s3 = inlined_call_operand.<no memory space> [shape: f32[1,1], index: 3, kind: input, shape index: {}]
  %s4 = inlined_call_operand.hbm [shape: f32[1,128], index: 4, kind: output, shape index: {}]
  %s5 = sld [smem:[#allocation0]]
  $region30: #{tpu_custom_call.1} parent=0
    _
  %s7 = ssub.s32 1, %s5
  %s8 = scalar_select 0, %s7, %s5
  %9 = sst [smem:[#allocation2]] %s3
  $region1: #{tpu_custom_call.1} parent=0
    #allocation3 [shape = 'u8[196608]{0}', space=vmem, size = 0x30000, scoped, tag = 'input window, operand 0, single buffered']
    #allocation4 [shape = 's32[1]{0}', space=sflag, size = 0x4, scoped, tag = 'scoped memory for tpu_custom_call.1']
    #allocation5 [shape = 's32[1]{0}', space=sflag, size = 0x4, scoped, tag = 'scoped memory for tpu_custom_call.1']
    #allocation6 [shape = 'u8[512]{0}', space=vmem, size = 0x400, scoped, tag = 'output window, operand 0, single buffered']
    %10 = vsyncpa [#allocation4], 0
    %11 = vsyncpa [#allocation5], 0
    // Predicated region
    $region2: #{tpu_custom_call.1} parent=1 // pred_check
      _
    $region3: #{tpu_custom_call.1} parent=1 // pred_check_branch
      %13 = sbr.rel (0) target = $region5
    $region4: #{tpu_custom_call.1} parent=1 // pred_region
      %s15 = ssub.s32 6144, 6144
      %16 = vsyncadd [#allocation4], %s15
      %s17 = sshll.u32 [#allocation3], 4
      %s18 = int_to_ptr.vmem [resolvable:$true] %s17
      %23 = dma.hbm_to_vmem [thread:$0]  %s0, 6144, %s18, [#allocation4], 2048, 2048, 128
    $region5: #{tpu_custom_call.1} parent=1 // pred_fallthru
      _
    // Predicated region
    $region6: #{tpu_custom_call.1} parent=1 // pred_check
      _
    $region7: #{tpu_custom_call.1} parent=1 // pred_check_branch
      %25 = sbr.rel (0) target = $region9
    $region8: #{tpu_custom_call.1} parent=1 // pred_region
      _
    $region9: #{tpu_custom_call.1} parent=1 // pred_fallthru
      _
    // Predicated region
    $region10: #{tpu_custom_call.1} parent=1 // pred_check
      _
    $region11: #{tpu_custom_call.1} parent=1 // pred_check_branch
      %27 = sbr.rel (0) target = $region13
    $region12: #{tpu_custom_call.1} parent=1 // pred_region
      _
    $region13: #{tpu_custom_call.1} parent=1 // pred_fallthru
      _
    // Predicated region
    $region14: #{tpu_custom_call.1} parent=1 // pred_check
      _
    $region15: #{tpu_custom_call.1} parent=1 // pred_check_branch
      %29 = sbr.rel (0) target = $region17
    $region16: #{tpu_custom_call.1} parent=1 // pred_region
      _
    $region17: #{tpu_custom_call.1} parent=1 // pred_fallthru
      _
    // Predicated region
    $region18: #{tpu_custom_call.1} parent=1 // pred_check
      _
    $region19: #{tpu_custom_call.1} parent=1 // pred_check_branch
      %31 = sbr.rel (0) target = $region21
    $region20: #{tpu_custom_call.1} parent=1 // pred_region
      %32 = dma.done [#allocation4], 6144
    $region21: #{tpu_custom_call.1} parent=1 // pred_fallthru
      _
    %v33 = vld [vmem:[%s1] sm:$0xff]
    %v34 = vld [vmem:[%s1 + $0x8] sm:$0xff]
    %v35 = vld [vmem:[%s1 + $0x10] sm:$0xff]
    %v36 = vld [vmem:[%s1 + $0x18] sm:$0xff]
    %v37 = vld [vmem:[#allocation3] sm:$0xff]
    %v38 = vld [vmem:[#allocation3 + $0x8] sm:$0xff]
    %v39 = vld [vmem:[#allocation3 + $0x10] sm:$0xff]
    %v40 = vld [vmem:[#allocation3 + $0x18] sm:$0xff]
    %v41 = vld [vmem:[#allocation3 + $0x20] sm:$0xff]
    %v42 = vld [vmem:[#allocation3 + $0x28] sm:$0xff]
    %v43 = vld [vmem:[#allocation3 + $0x30] sm:$0xff]
    %v44 = vld [vmem:[#allocation3 + $0x38] sm:$0xff]
    %v45 = vld [vmem:[#allocation3 + $0x40] sm:$0xff]
    %v46 = vld [vmem:[#allocation3 + $0x48] sm:$0xff]
    %v47 = vld [vmem:[#allocation3 + $0x50] sm:$0xff]
    %v48 = vld [vmem:[#allocation3 + $0x58] sm:$0xff]
    %v49 = vld [vmem:[#allocation3 + $0x60] sm:$0xff]
    %v50 = vld [vmem:[#allocation3 + $0x68] sm:$0xff]
    %v51 = vld [vmem:[#allocation3 + $0x70] sm:$0xff]
    %v52 = vld [vmem:[#allocation3 + $0x78] sm:$0xff]
    %v53 = vld [vmem:[#allocation3 + $0x80] sm:$0xff]
    %v54 = vld [vmem:[#allocation3 + $0x88] sm:$0xff]
    %v55 = vld [vmem:[#allocation3 + $0x90] sm:$0xff]
    %v56 = vld [vmem:[#allocation3 + $0x98] sm:$0xff]
    %v57 = vld [vmem:[#allocation3 + $0xa0] sm:$0xff]
    %v58 = vld [vmem:[#allocation3 + $0xa8] sm:$0xff]
    %v59 = vld [vmem:[#allocation3 + $0xb0] sm:$0xff]
    %v60 = vld [vmem:[#allocation3 + $0xb8] sm:$0xff]
    %v61 = vld [vmem:[#allocation3 + $0xc0] sm:$0xff]
    %v62 = vld [vmem:[#allocation3 + $0xc8] sm:$0xff]
    %v63 = vld [vmem:[#allocation3 + $0xd0] sm:$0xff]
    %v64 = vld [vmem:[#allocation3 + $0xd8] sm:$0xff]
    %v65 = vld [vmem:[#allocation3 + $0xe0] sm:$0xff]
    %v66 = vld [vmem:[#allocation3 + $0xe8] sm:$0xff]
    %v67 = vld [vmem:[#allocation3 + $0xf0] sm:$0xff]
    %v68 = vld [vmem:[#allocation3 + $0xf8] sm:$0xff]
    %v69 = vld [vmem:[#allocation3 + $0x100] sm:$0x1]
    %v70 = vld [vmem:[#allocation3 + $0x108] sm:$0x1]
    %v71 = vld [vmem:[#allocation3 + $0x110] sm:$0x1]
    %v72 = vld [vmem:[#allocation3 + $0x118] sm:$0x1]
    %v73 = vld [vmem:[#allocation3 + $0x120] sm:$0x1]
    %v74 = vld [vmem:[#allocation3 + $0x128] sm:$0x1]
    %v75 = vld [vmem:[#allocation3 + $0x130] sm:$0x1]
    %v76 = vld [vmem:[#allocation3 + $0x138] sm:$0x1]
    %v77 = vld [vmem:[#allocation3 + $0x140] sm:$0x1]
    %v78 = vld [vmem:[#allocation3 + $0x148] sm:$0x1]
    %v79 = vld [vmem:[#allocation3 + $0x150] sm:$0x1]
    %v80 = vld [vmem:[#allocation3 + $0x158] sm:$0x1]
    %v81 = vld [vmem:[#allocation3 + $0x160] sm:$0x1]
    %v82 = vld [vmem:[#allocation3 + $0x168] sm:$0x1]
    %v83 = vld [vmem:[#allocation3 + $0x170] sm:$0x1]
    %v84 = vld [vmem:[#allocation3 + $0x178] sm:$0x1]
    %vm85 = vcmask 138240
    %v87 = vsel %vm85, %v33, 0
    %v90 = vsel %vm85, %v34, 0
    %v93 = vsel %vm85, %v35, 0
    %v96 = vsel %vm85, %v36, 0
    %vm98 = vcmask 1040384
    %v100 = vsel %vm98, %v69, 0
    %v103 = vsel %vm98, %v70, 0
    %v106 = vsel %vm98, %v71, 0
    %v109 = vsel %vm98, %v72, 0
    %v112 = vsel %vm98, %v73, 0
    %v115 = vsel %vm98, %v74, 0
    %v118 = vsel %vm98, %v75, 0
    %v121 = vsel %vm98, %v76, 0
    %v124 = vsel %vm98, %v77, 0
    %v127 = vsel %vm98, %v78, 0
    %v130 = vsel %vm98, %v79, 0
    %v133 = vsel %vm98, %v80, 0
    %v136 = vsel %vm98, %v81, 0
    %v139 = vsel %vm98, %v82, 0
    %v142 = vsel %vm98, %v83, 0
    %v145 = vsel %vm98, %v84, 0
    %147 = vmatprep.subr.mxu0 0.0
    %148 = vmatpush1.msra.mxu0 0.0
    %149 = vmatprep.subr.mxu0 0.0
    %150 = vmatpush1.msra.mxu0 0.0
    %151 = vmatprep.subr.mxu0 0.0
    %152 = vmatpush1.msra.mxu0 0.0
    %153 = vmatprep.subr.mxu0 0.0
    %154 = vmatpush1.msra.mxu0 0.0
    %155 = vmatprep.subr.mxu0 0.0
    %156 = vmatpush1.msra.mxu0 0.0
    %157 = vmatprep.subr.mxu0 0.0
    %158 = vmatpush1.msra.mxu0 0.0
    %159 = vmatprep.subr.mxu0 0.0
    %160 = vmatpush1.msra.mxu0 0.0
    %161 = vmatprep.subr.mxu0 0.0
    %162 = vmatpush1.msra.mxu0 0.0
    %163 = vmatprep.subr.mxu0 0.0
    %164 = vmatpush1.msra.mxu0 0.0
    %165 = vmatprep.subr.mxu0 0.0
    %166 = vmatpush1.msra.mxu0 0.0
    %167 = vmatprep.subr.mxu0 0.0
    %168 = vmatpush1.msra.mxu0 0.0
    %169 = vmatprep.subr.mxu0 0.0
    %170 = vmatpush1.msra.mxu0 0.0
    %171 = vmatprep.subr.mxu0 0.0
    %172 = vmatpush1.msra.mxu0 0.0
    %173 = vmatprep.subr.mxu0 %v103
    %174 = vmatpush1.msra.mxu0 %v100
    %175 = vmatprep.subr.mxu0 %v54
    %176 = vmatpush1.msra.mxu0 %v53
    %177 = vmatprep.subr.mxu0 %v38
    %178 = vmatpush1.msra.mxu0 %v37
    %179 = vmatprep.subr.mxu0 0.0
    %180 = vmatpush2.msra.mxu0 0.0
    %181 = vmatprep.subr.mxu0 0.0
    %182 = vmatpush2.msra.mxu0 0.0
    %183 = vmatprep.subr.mxu0 0.0
    %184 = vmatpush2.msra.mxu0 0.0
    %185 = vmatprep.subr.mxu0 0.0
    %186 = vmatpush2.msra.mxu0 0.0
    %187 = vmatprep.subr.mxu0 0.0
    %188 = vmatpush2.msra.mxu0 0.0
    %189 = vmatprep.subr.mxu0 0.0
    %190 = vmatpush2.msra.mxu0 0.0
    %191 = vmatprep.subr.mxu0 0.0
    %192 = vmatpush2.msra.mxu0 0.0
    %193 = vmatprep.subr.mxu0 0.0
    %194 = vmatpush2.msra.mxu0 0.0
    %195 = vmatprep.subr.mxu0 0.0
    %196 = vmatpush2.msra.mxu0 0.0
    %197 = vmatprep.subr.mxu0 0.0
    %198 = vmatpush2.msra.mxu0 0.0
    %199 = vmatprep.subr.mxu0 0.0
    %200 = vmatpush2.msra.mxu0 0.0
    %201 = vmatprep.subr.mxu0 0.0
    %202 = vmatpush2.msra.mxu0 0.0
    %203 = vmatprep.subr.mxu0 0.0
    %204 = vmatpush2.msra.mxu0 0.0
    %205 = vmatprep.subr.mxu0 0.0
    %206 = vmatpush2.msra.mxu0 0.0
    %207 = vmatprep.subr.mxu0 0.0
    %208 = vmatpush2.msra.mxu0 0.0
    %209 = vmatprep.subr.mxu0 0.0
    %210 = vmatpush2.msra.mxu0 0.0
    %211 = vmatprep.mubr.f32.mxu0 0.0
    %212 = vmatmul.mubr.f32.gmra.mxu0 %v87
    %v213 = vpop.f32.mrf.mxu0
    %v214 = vadd.f32 0.0, %v213
    %v215 = vpop.f32.mrf.mxu0
    %v216 = vadd.f32 0.0, %v215
    %217 = vmatprep.mubr.f32.mxu0 0.0
    %218 = vmatmul.mubr.f32.gmra.mxu0 %v90
    %v219 = vpop.f32.mrf.mxu0
    %v220 = vadd.f32 0.0, %v219
    %v221 = vpop.f32.mrf.mxu0
    %v222 = vadd.f32 0.0, %v221
    %223 = vmatprep.mubr.f32.mxu0 0.0
    %224 = vmatmul.mubr.f32.gmra.mxu0 %v93
    %v225 = vpop.f32.mrf.mxu0
    %v226 = vadd.f32 0.0, %v225
    %v227 = vpop.f32.mrf.mxu0
    %v228 = vadd.f32 0.0, %v227
    %229 = vmatprep.mubr.f32.mxu0 0.0
    %230 = vmatmul.mubr.f32.gmra.mxu0 %v96
    %v231 = vpop.f32.mrf.mxu0
    %v232 = vadd.f32 0.0, %v231
    %v233 = vpop.f32.mrf.mxu0
    %v234 = vadd.f32 0.0, %v233
    %235 = vdwg.mxu0
    %236 = vmatprep.subr.mxu0 0.0
    %237 = vmatpush1.msra.mxu0 0.0
    %238 = vmatprep.subr.mxu0 0.0
    %239 = vmatpush1.msra.mxu0 0.0
    %240 = vmatprep.subr.mxu0 0.0
    %241 = vmatpush1.msra.mxu0 0.0
    %242 = vmatprep.subr.mxu0 0.0
    %243 = vmatpush1.msra.mxu0 0.0
    %244 = vmatprep.subr.mxu0 0.0
    %245 = vmatpush1.msra.mxu0 0.0
    %246 = vmatprep.subr.mxu0 0.0
    %247 = vmatpush1.msra.mxu0 0.0
    %248 = vmatprep.subr.mxu0 0.0
    %249 = vmatpush1.msra.mxu0 0.0
    %250 = vmatprep.subr.mxu0 0.0
    %251 = vmatpush1.msra.mxu0 0.0
    %252 = vmatprep.subr.mxu0 0.0
    %253 = vmatpush1.msra.mxu0 0.0
    %254 = vmatprep.subr.mxu0 0.0
    %255 = vmatpush1.msra.mxu0 0.0
    %256 = vmatprep.subr.mxu0 0.0
    %257 = vmatpush1.msra.mxu0 0.0
    %258 = vmatprep.subr.mxu0 0.0
    %259 = vmatpush1.msra.mxu0 0.0
    %260 = vmatprep.subr.mxu0 0.0
    %261 = vmatpush1.msra.mxu0 0.0
    %262 = vmatprep.subr.mxu0 %v109
    %263 = vmatpush1.msra.mxu0 %v106
    %264 = vmatprep.subr.mxu0 %v56
    %265 = vmatpush1.msra.mxu0 %v55
    %266 = vmatprep.subr.mxu0 %v40
    %267 = vmatpush1.msra.mxu0 %v39
    %268 = vmatprep.subr.mxu0 0.0
    %269 = vmatpush2.msra.mxu0 0.0
    %270 = vmatprep.subr.mxu0 0.0
    %271 = vmatpush2.msra.mxu0 0.0
    %272 = vmatprep.subr.mxu0 0.0
    %273 = vmatpush2.msra.mxu0 0.0
    %274 = vmatprep.subr.mxu0 0.0
    %275 = vmatpush2.msra.mxu0 0.0
    %276 = vmatprep.subr.mxu0 0.0
    %277 = vmatpush2.msra.mxu0 0.0
    %278 = vmatprep.subr.mxu0 0.0
    %279 = vmatpush2.msra.mxu0 0.0
    %280 = vmatprep.subr.mxu0 0.0
    %281 = vmatpush2.msra.mxu0 0.0
    %282 = vmatprep.subr.mxu0 0.0
    %283 = vmatpush2.msra.mxu0 0.0
    %284 = vmatprep.subr.mxu0 0.0
    %285 = vmatpush2.msra.mxu0 0.0
    %286 = vmatprep.subr.mxu0 0.0
    %287 = vmatpush2.msra.mxu0 0.0
    %288 = vmatprep.subr.mxu0 0.0
    %289 = vmatpush2.msra.mxu0 0.0
    %290 = vmatprep.subr.mxu0 0.0
    %291 = vmatpush2.msra.mxu0 0.0
    %292 = vmatprep.subr.mxu0 0.0
    %293 = vmatpush2.msra.mxu0 0.0
    %294 = vmatprep.subr.mxu0 0.0
    %295 = vmatpush2.msra.mxu0 0.0
    %296 = vmatprep.subr.mxu0 0.0
    %297 = vmatpush2.msra.mxu0 0.0
    %298 = vmatprep.subr.mxu0 0.0
    %299 = vmatpush2.msra.mxu0 0.0
    %300 = vmatprep.mubr.f32.mxu0 0.0
    %301 = vmatmul.mubr.f32.gmra.mxu0 %v87
    %v302 = vpop.f32.mrf.mxu0
    %v303 = vadd.f32 0.0, %v302
    %v304 = vpop.f32.mrf.mxu0
    %v305 = vadd.f32 0.0, %v304
    %306 = vmatprep.mubr.f32.mxu0 0.0
    %307 = vmatmul.mubr.f32.gmra.mxu0 %v90
    %v308 = vpop.f32.mrf.mxu0
    %v309 = vadd.f32 0.0, %v308
    %v310 = vpop.f32.mrf.mxu0
    %v311 = vadd.f32 0.0, %v310
    %312 = vmatprep.mubr.f32.mxu0 0.0
    %313 = vmatmul.mubr.f32.gmra.mxu0 %v93
    %v314 = vpop.f32.mrf.mxu0
    %v315 = vadd.f32 0.0, %v314
    %v316 = vpop.f32.mrf.mxu0
    %v317 = vadd.f32 0.0, %v316
    %318 = vmatprep.mubr.f32.mxu0 0.0
    %319 = vmatmul.mubr.f32.gmra.mxu0 %v96
    %v320 = vpop.f32.mrf.mxu0
    %v321 = vadd.f32 0.0, %v320
    %v322 = vpop.f32.mrf.mxu0
    %v323 = vadd.f32 0.0, %v322
    %324 = vdwg.mxu0
    %325 = vmatprep.subr.mxu0 0.0
    %326 = vmatpush1.msra.mxu0 0.0
    %327 = vmatprep.subr.mxu0 0.0
    %328 = vmatpush1.msra.mxu0 0.0
    %329 = vmatprep.subr.mxu0 0.0
    %330 = vmatpush1.msra.mxu0 0.0
    %331 = vmatprep.subr.mxu0 0.0
    %332 = vmatpush1.msra.mxu0 0.0
    %333 = vmatprep.subr.mxu0 0.0
    %334 = vmatpush1.msra.mxu0 0.0
    %335 = vmatprep.subr.mxu0 0.0
    %336 = vmatpush1.msra.mxu0 0.0
    %337 = vmatprep.subr.mxu0 0.0
    %338 = vmatpush1.msra.mxu0 0.0
    %339 = vmatprep.subr.mxu0 0.0
    %340 = vmatpush1.msra.mxu0 0.0
    %341 = vmatprep.subr.mxu0 0.0
    %342 = vmatpush1.msra.mxu0 0.0
    %343 = vmatprep.subr.mxu0 0.0
    %344 = vmatpush1.msra.mxu0 0.0
    %345 = vmatprep.subr.mxu0 0.0
    %346 = vmatpush1.msra.mxu0 0.0
    %347 = vmatprep.subr.mxu0 0.0
    %348 = vmatpush1.msra.mxu0 0.0
    %349 = vmatprep.subr.mxu0 0.0
    %350 = vmatpush1.msra.mxu0 0.0
    %351 = vmatprep.subr.mxu0 %v115
    %352 = vmatpush1.msra.mxu0 %v112
    %353 = vmatprep.subr.mxu0 %v58
    %354 = vmatpush1.msra.mxu0 %v57
    %355 = vmatprep.subr.mxu0 %v42
    %356 = vmatpush1.msra.mxu0 %v41
    %357 = vmatprep.subr.mxu0 0.0
    %358 = vmatpush2.msra.mxu0 0.0
    %359 = vmatprep.subr.mxu0 0.0
    %360 = vmatpush2.msra.mxu0 0.0
    %361 = vmatprep.subr.mxu0 0.0
    %362 = vmatpush2.msra.mxu0 0.0
    %363 = vmatprep.subr.mxu0 0.0
    %364 = vmatpush2.msra.mxu0 0.0
    %365 = vmatprep.subr.mxu0 0.0
    %366 = vmatpush2.msra.mxu0 0.0
    %367 = vmatprep.subr.mxu0 0.0
    %368 = vmatpush2.msra.mxu0 0.0
    %369 = vmatprep.subr.mxu0 0.0
    %370 = vmatpush2.msra.mxu0 0.0
    %371 = vmatprep.subr.mxu0 0.0
    %372 = vmatpush2.msra.mxu0 0.0
    %373 = vmatprep.subr.mxu0 0.0
    %374 = vmatpush2.msra.mxu0 0.0
    %375 = vmatprep.subr.mxu0 0.0
    %376 = vmatpush2.msra.mxu0 0.0
    %377 = vmatprep.subr.mxu0 0.0
    %378 = vmatpush2.msra.mxu0 0.0
    %379 = vmatprep.subr.mxu0 0.0
    %380 = vmatpush2.msra.mxu0 0.0
    %381 = vmatprep.subr.mxu0 0.0
    %382 = vmatpush2.msra.mxu0 0.0
    %383 = vmatprep.subr.mxu0 0.0
    %384 = vmatpush2.msra.mxu0 0.0
    %385 = vmatprep.subr.mxu0 0.0
    %386 = vmatpush2.msra.mxu0 0.0
    %387 = vmatprep.subr.mxu0 0.0
    %388 = vmatpush2.msra.mxu0 0.0
    %389 = vmatprep.mubr.f32.mxu0 0.0
    %390 = vmatmul.mubr.f32.gmra.mxu0 %v87
    %v391 = vpop.f32.mrf.mxu0
    %v392 = vadd.f32 0.0, %v391
    %v393 = vpop.f32.mrf.mxu0
    %v394 = vadd.f32 0.0, %v393
    %395 = vmatprep.mubr.f32.mxu0 0.0
    %396 = vmatmul.mubr.f32.gmra.mxu0 %v90
    %v397 = vpop.f32.mrf.mxu0
    %v398 = vadd.f32 0.0, %v397
    %v399 = vpop.f32.mrf.mxu0
    %v400 = vadd.f32 0.0, %v399
    %401 = vmatprep.mubr.f32.mxu0 0.0
    %402 = vmatmul.mubr.f32.gmra.mxu0 %v93
    %v403 = vpop.f32.mrf.mxu0
    %v404 = vadd.f32 0.0, %v403
    %v405 = vpop.f32.mrf.mxu0
    %v406 = vadd.f32 0.0, %v405
    %407 = vmatprep.mubr.f32.mxu0 0.0
    %408 = vmatmul.mubr.f32.gmra.mxu0 %v96
    %v409 = vpop.f32.mrf.mxu0
    %v410 = vadd.f32 0.0, %v409
    %v411 = vpop.f32.mrf.mxu0
    %v412 = vadd.f32 0.0, %v411
    %413 = vdwg.mxu0
    %414 = vmatprep.subr.mxu0 0.0
    %415 = vmatpush1.msra.mxu0 0.0
    %416 = vmatprep.subr.mxu0 0.0
    %417 = vmatpush1.msra.mxu0 0.0
    %418 = vmatprep.subr.mxu0 0.0
    %419 = vmatpush1.msra.mxu0 0.0
    %420 = vmatprep.subr.mxu0 0.0
    %421 = vmatpush1.msra.mxu0 0.0
    %422 = vmatprep.subr.mxu0 0.0
    %423 = vmatpush1.msra.mxu0 0.0
    %424 = vmatprep.subr.mxu0 0.0
    %425 = vmatpush1.msra.mxu0 0.0
    %426 = vmatprep.subr.mxu0 0.0
    %427 = vmatpush1.msra.mxu0 0.0
    %428 = vmatprep.subr.mxu0 0.0
    %429 = vmatpush1.msra.mxu0 0.0
    %430 = vmatprep.subr.mxu0 0.0
    %431 = vmatpush1.msra.mxu0 0.0
    %432 = vmatprep.subr.mxu0 0.0
    %433 = vmatpush1.msra.mxu0 0.0
    %434 = vmatprep.subr.mxu0 0.0
    %435 = vmatpush1.msra.mxu0 0.0
    %436 = vmatprep.subr.mxu0 0.0
    %437 = vmatpush1.msra.mxu0 0.0
    %438 = vmatprep.subr.mxu0 0.0
    %439 = vmatpush1.msra.mxu0 0.0
    %440 = vmatprep.subr.mxu0 %v121
    %441 = vmatpush1.msra.mxu0 %v118
    %442 = vmatprep.subr.mxu0 %v60
    %443 = vmatpush1.msra.mxu0 %v59
    %444 = vmatprep.subr.mxu0 %v44
    %445 = vmatpush1.msra.mxu0 %v43
    %446 = vmatprep.subr.mxu0 0.0
    %447 = vmatpush2.msra.mxu0 0.0
    %448 = vmatprep.subr.mxu0 0.0
    %449 = vmatpush2.msra.mxu0 0.0
    %450 = vmatprep.subr.mxu0 0.0
    %451 = vmatpush2.msra.mxu0 0.0
    %452 = vmatprep.subr.mxu0 0.0
    %453 = vmatpush2.msra.mxu0 0.0
    %454 = vmatprep.subr.mxu0 0.0
    %455 = vmatpush2.msra.mxu0 0.0
    %456 = vmatprep.subr.mxu0 0.0
    %457 = vmatpush2.msra.mxu0 0.0
    %458 = vmatprep.subr.mxu0 0.0
    %459 = vmatpush2.msra.mxu0 0.0
    %460 = vmatprep.subr.mxu0 0.0
    %461 = vmatpush2.msra.mxu0 0.0
    %462 = vmatprep.subr.mxu0 0.0
    %463 = vmatpush2.msra.mxu0 0.0
    %464 = vmatprep.subr.mxu0 0.0
    %465 = vmatpush2.msra.mxu0 0.0
    %466 = vmatprep.subr.mxu0 0.0
    %467 = vmatpush2.msra.mxu0 0.0
    %468 = vmatprep.subr.mxu0 0.0
    %469 = vmatpush2.msra.mxu0 0.0
    %470 = vmatprep.subr.mxu0 0.0
    %471 = vmatpush2.msra.mxu0 0.0
    %472 = vmatprep.subr.mxu0 0.0
    %473 = vmatpush2.msra.mxu0 0.0
    %474 = vmatprep.subr.mxu0 0.0
    %475 = vmatpush2.msra.mxu0 0.0
    %476 = vmatprep.subr.mxu0 0.0
    %477 = vmatpush2.msra.mxu0 0.0
    %478 = vmatprep.mubr.f32.mxu0 0.0
    %479 = vmatmul.mubr.f32.gmra.mxu0 %v87
    %v480 = vpop.f32.mrf.mxu0
    %v481 = vadd.f32 0.0, %v480
    %v482 = vpop.f32.mrf.mxu0
    %v483 = vadd.f32 0.0, %v482
    %484 = vmatprep.mubr.f32.mxu0 0.0
    %485 = vmatmul.mubr.f32.gmra.mxu0 %v90
    %v486 = vpop.f32.mrf.mxu0
    %v487 = vadd.f32 0.0, %v486
    %v488 = vpop.f32.mrf.mxu0
    %v489 = vadd.f32 0.0, %v488
    %490 = vmatprep.mubr.f32.mxu0 0.0
    %491 = vmatmul.mubr.f32.gmra.mxu0 %v93
    %v492 = vpop.f32.mrf.mxu0
    %v493 = vadd.f32 0.0, %v492
    %v494 = vpop.f32.mrf.mxu0
    %v495 = vadd.f32 0.0, %v494
    %496 = vmatprep.mubr.f32.mxu0 0.0
    %497 = vmatmul.mubr.f32.gmra.mxu0 %v96
    %v498 = vpop.f32.mrf.mxu0
    %v499 = vadd.f32 0.0, %v498
    %v500 = vpop.f32.mrf.mxu0
    %v501 = vadd.f32 0.0, %v500
    %502 = vdwg.mxu0
    %503 = vmatprep.subr.mxu0 0.0
    %504 = vmatpush1.msra.mxu0 0.0
    %505 = vmatprep.subr.mxu0 0.0
    %506 = vmatpush1.msra.mxu0 0.0
    %507 = vmatprep.subr.mxu0 0.0
    %508 = vmatpush1.msra.mxu0 0.0
    %509 = vmatprep.subr.mxu0 0.0
    %510 = vmatpush1.msra.mxu0 0.0
    %511 = vmatprep.subr.mxu0 0.0
    %512 = vmatpush1.msra.mxu0 0.0
    %513 = vmatprep.subr.mxu0 0.0
    %514 = vmatpush1.msra.mxu0 0.0
    %515 = vmatprep.subr.mxu0 0.0
    %516 = vmatpush1.msra.mxu0 0.0
    %517 = vmatprep.subr.mxu0 0.0
    %518 = vmatpush1.msra.mxu0 0.0
    %519 = vmatprep.subr.mxu0 0.0
    %520 = vmatpush1.msra.mxu0 0.0
    %521 = vmatprep.subr.mxu0 0.0
    %522 = vmatpush1.msra.mxu0 0.0
    %523 = vmatprep.subr.mxu0 0.0
    %524 = vmatpush1.msra.mxu0 0.0
    %525 = vmatprep.subr.mxu0 0.0
    %526 = vmatpush1.msra.mxu0 0.0
    %527 = vmatprep.subr.mxu0 0.0
    %528 = vmatpush1.msra.mxu0 0.0
    %529 = vmatprep.subr.mxu0 %v127
    %530 = vmatpush1.msra.mxu0 %v124
    %531 = vmatprep.subr.mxu0 %v62
    %532 = vmatpush1.msra.mxu0 %v61
    %533 = vmatprep.subr.mxu0 %v46
    %534 = vmatpush1.msra.mxu0 %v45
    %535 = vmatprep.subr.mxu0 0.0
    %536 = vmatpush2.msra.mxu0 0.0
    %537 = vmatprep.subr.mxu0 0.0
    %538 = vmatpush2.msra.mxu0 0.0
    %539 = vmatprep.subr.mxu0 0.0
    %540 = vmatpush2.msra.mxu0 0.0
    %541 = vmatprep.subr.mxu0 0.0
    %542 = vmatpush2.msra.mxu0 0.0
    %543 = vmatprep.subr.mxu0 0.0
    %544 = vmatpush2.msra.mxu0 0.0
    %545 = vmatprep.subr.mxu0 0.0
    %546 = vmatpush2.msra.mxu0 0.0
    %547 = vmatprep.subr.mxu0 0.0
    %548 = vmatpush2.msra.mxu0 0.0
    %549 = vmatprep.subr.mxu0 0.0
    %550 = vmatpush2.msra.mxu0 0.0
    %551 = vmatprep.subr.mxu0 0.0
    %552 = vmatpush2.msra.mxu0 0.0
    %553 = vmatprep.subr.mxu0 0.0
    %554 = vmatpush2.msra.mxu0 0.0
    %555 = vmatprep.subr.mxu0 0.0
    %556 = vmatpush2.msra.mxu0 0.0
    %557 = vmatprep.subr.mxu0 0.0
    %558 = vmatpush2.msra.mxu0 0.0
    %559 = vmatprep.subr.mxu0 0.0
    %560 = vmatpush2.msra.mxu0 0.0
    %561 = vmatprep.subr.mxu0 0.0
    %562 = vmatpush2.msra.mxu0 0.0
    %563 = vmatprep.subr.mxu0 0.0
    %564 = vmatpush2.msra.mxu0 0.0
    %565 = vmatprep.subr.mxu0 0.0
    %566 = vmatpush2.msra.mxu0 0.0
    %567 = vmatprep.mubr.f32.mxu0 0.0
    %568 = vmatmul.mubr.f32.gmra.mxu0 %v87
    %v569 = vpop.f32.mrf.mxu0
    %v570 = vadd.f32 0.0, %v569
    %v571 = vpop.f32.mrf.mxu0
    %v572 = vadd.f32 0.0, %v571
    %573 = vmatprep.mubr.f32.mxu0 0.0
    %574 = vmatmul.mubr.f32.gmra.mxu0 %v90
    %v575 = vpop.f32.mrf.mxu0
    %v576 = vadd.f32 0.0, %v575
    %v577 = vpop.f32.mrf.mxu0
    %v578 = vadd.f32 0.0, %v577
    %579 = vmatprep.mubr.f32.mxu0 0.0
    %580 = vmatmul.mubr.f32.gmra.mxu0 %v93
    %v581 = vpop.f32.mrf.mxu0
    %v582 = vadd.f32 0.0, %v581
    %v583 = vpop.f32.mrf.mxu0
    %v584 = vadd.f32 0.0, %v583
    %585 = vmatprep.mubr.f32.mxu0 0.0
    %586 = vmatmul.mubr.f32.gmra.mxu0 %v96
    %v587 = vpop.f32.mrf.mxu0
    %v588 = vadd.f32 0.0, %v587
    %v589 = vpop.f32.mrf.mxu0
    %v590 = vadd.f32 0.0, %v589
    %591 = vdwg.mxu0
    %592 = vmatprep.subr.mxu0 0.0
    %593 = vmatpush1.msra.mxu0 0.0
    %594 = vmatprep.subr.mxu0 0.0
    %595 = vmatpush1.msra.mxu0 0.0
    %596 = vmatprep.subr.mxu0 0.0
    %597 = vmatpush1.msra.mxu0 0.0
    %598 = vmatprep.subr.mxu0 0.0
    %599 = vmatpush1.msra.mxu0 0.0
    %600 = vmatprep.subr.mxu0 0.0
    %601 = vmatpush1.msra.mxu0 0.0
    %602 = vmatprep.subr.mxu0 0.0
    %603 = vmatpush1.msra.mxu0 0.0
    %604 = vmatprep.subr.mxu0 0.0
    %605 = vmatpush1.msra.mxu0 0.0
    %606 = vmatprep.subr.mxu0 0.0
    %607 = vmatpush1.msra.mxu0 0.0
    %608 = vmatprep.subr.mxu0 0.0
    %609 = vmatpush1.msra.mxu0 0.0
    %610 = vmatprep.subr.mxu0 0.0
    %611 = vmatpush1.msra.mxu0 0.0
    %612 = vmatprep.subr.mxu0 0.0
    %613 = vmatpush1.msra.mxu0 0.0
    %614 = vmatprep.subr.mxu0 0.0
    %615 = vmatpush1.msra.mxu0 0.0
    %616 = vmatprep.subr.mxu0 0.0
    %617 = vmatpush1.msra.mxu0 0.0
    %618 = vmatprep.subr.mxu0 %v133
    %619 = vmatpush1.msra.mxu0 %v130
    %620 = vmatprep.subr.mxu0 %v64
    %621 = vmatpush1.msra.mxu0 %v63
    %622 = vmatprep.subr.mxu0 %v48
    %623 = vmatpush1.msra.mxu0 %v47
    %624 = vmatprep.subr.mxu0 0.0
    %625 = vmatpush2.msra.mxu0 0.0
    %626 = vmatprep.subr.mxu0 0.0
    %627 = vmatpush2.msra.mxu0 0.0
    %628 = vmatprep.subr.mxu0 0.0
    %629 = vmatpush2.msra.mxu0 0.0
    %630 = vmatprep.subr.mxu0 0.0
    %631 = vmatpush2.msra.mxu0 0.0
    %632 = vmatprep.subr.mxu0 0.0
    %633 = vmatpush2.msra.mxu0 0.0
    %634 = vmatprep.subr.mxu0 0.0
    %635 = vmatpush2.msra.mxu0 0.0
    %636 = vmatprep.subr.mxu0 0.0
    %637 = vmatpush2.msra.mxu0 0.0
    %638 = vmatprep.subr.mxu0 0.0
    %639 = vmatpush2.msra.mxu0 0.0
    %640 = vmatprep.subr.mxu0 0.0
    %641 = vmatpush2.msra.mxu0 0.0
    %642 = vmatprep.subr.mxu0 0.0
    %643 = vmatpush2.msra.mxu0 0.0
    %644 = vmatprep.subr.mxu0 0.0
    %645 = vmatpush2.msra.mxu0 0.0
    %646 = vmatprep.subr.mxu0 0.0
    %647 = vmatpush2.msra.mxu0 0.0
    %648 = vmatprep.subr.mxu0 0.0
    %649 = vmatpush2.msra.mxu0 0.0
    %650 = vmatprep.subr.mxu0 0.0
    %651 = vmatpush2.msra.mxu0 0.0
    %652 = vmatprep.subr.mxu0 0.0
    %653 = vmatpush2.msra.mxu0 0.0
    %654 = vmatprep.subr.mxu0 0.0
    %655 = vmatpush2.msra.mxu0 0.0
    %656 = vmatprep.mubr.f32.mxu0 0.0
    %657 = vmatmul.mubr.f32.gmra.mxu0 %v87
    %v658 = vpop.f32.mrf.mxu0
    %v659 = vadd.f32 0.0, %v658
    %v660 = vpop.f32.mrf.mxu0
    %v661 = vadd.f32 0.0, %v660
    %662 = vmatprep.mubr.f32.mxu0 0.0
    %663 = vmatmul.mubr.f32.gmra.mxu0 %v90
    %v664 = vpop.f32.mrf.mxu0
    %v665 = vadd.f32 0.0, %v664
    %v666 = vpop.f32.mrf.mxu0
    %v667 = vadd.f32 0.0, %v666
    %668 = vmatprep.mubr.f32.mxu0 0.0
    %669 = vmatmul.mubr.f32.gmra.mxu0 %v93
    %v670 = vpop.f32.mrf.mxu0
    %v671 = vadd.f32 0.0, %v670
    %v672 = vpop.f32.mrf.mxu0
    %v673 = vadd.f32 0.0, %v672
    %674 = vmatprep.mubr.f32.mxu0 0.0
    %675 = vmatmul.mubr.f32.gmra.mxu0 %v96
    %v676 = vpop.f32.mrf.mxu0
    %v677 = vadd.f32 0.0, %v676
    %v678 = vpop.f32.mrf.mxu0
    %v679 = vadd.f32 0.0, %v678
    %680 = vdwg.mxu0
    %681 = vmatprep.subr.mxu0 0.0
    %682 = vmatpush1.msra.mxu0 0.0
    %683 = vmatprep.subr.mxu0 0.0
    %684 = vmatpush1.msra.mxu0 0.0
    %685 = vmatprep.subr.mxu0 0.0
    %686 = vmatpush1.msra.mxu0 0.0
    %687 = vmatprep.subr.mxu0 0.0
    %688 = vmatpush1.msra.mxu0 0.0
    %689 = vmatprep.subr.mxu0 0.0
    %690 = vmatpush1.msra.mxu0 0.0
    %691 = vmatprep.subr.mxu0 0.0
    %692 = vmatpush1.msra.mxu0 0.0
    %693 = vmatprep.subr.mxu0 0.0
    %694 = vmatpush1.msra.mxu0 0.0
    %695 = vmatprep.subr.mxu0 0.0
    %696 = vmatpush1.msra.mxu0 0.0
    %697 = vmatprep.subr.mxu0 0.0
    %698 = vmatpush1.msra.mxu0 0.0
    %699 = vmatprep.subr.mxu0 0.0
    %700 = vmatpush1.msra.mxu0 0.0
    %701 = vmatprep.subr.mxu0 0.0
    %702 = vmatpush1.msra.mxu0 0.0
    %703 = vmatprep.subr.mxu0 0.0
    %704 = vmatpush1.msra.mxu0 0.0
    %705 = vmatprep.subr.mxu0 0.0
    %706 = vmatpush1.msra.mxu0 0.0
    %707 = vmatprep.subr.mxu0 %v139
    %708 = vmatpush1.msra.mxu0 %v136
    %709 = vmatprep.subr.mxu0 %v66
    %710 = vmatpush1.msra.mxu0 %v65
    %711 = vmatprep.subr.mxu0 %v50
    %712 = vmatpush1.msra.mxu0 %v49
    %713 = vmatprep.subr.mxu0 0.0
    %714 = vmatpush2.msra.mxu0 0.0
    %715 = vmatprep.subr.mxu0 0.0
    %716 = vmatpush2.msra.mxu0 0.0
    %717 = vmatprep.subr.mxu0 0.0
    %718 = vmatpush2.msra.mxu0 0.0
    %719 = vmatprep.subr.mxu0 0.0
    %720 = vmatpush2.msra.mxu0 0.0
    %721 = vmatprep.subr.mxu0 0.0
    %722 = vmatpush2.msra.mxu0 0.0
    %723 = vmatprep.subr.mxu0 0.0
    %724 = vmatpush2.msra.mxu0 0.0
    %725 = vmatprep.subr.mxu0 0.0
    %726 = vmatpush2.msra.mxu0 0.0
    %727 = vmatprep.subr.mxu0 0.0
    %728 = vmatpush2.msra.mxu0 0.0
    %729 = vmatprep.subr.mxu0 0.0
    %730 = vmatpush2.msra.mxu0 0.0
    %731 = vmatprep.subr.mxu0 0.0
    %732 = vmatpush2.msra.mxu0 0.0
    %733 = vmatprep.subr.mxu0 0.0
    %734 = vmatpush2.msra.mxu0 0.0
    %735 = vmatprep.subr.mxu0 0.0
    %736 = vmatpush2.msra.mxu0 0.0
    %737 = vmatprep.subr.mxu0 0.0
    %738 = vmatpush2.msra.mxu0 0.0
    %739 = vmatprep.subr.mxu0 0.0
    %740 = vmatpush2.msra.mxu0 0.0
    %741 = vmatprep.subr.mxu0 0.0
    %742 = vmatpush2.msra.mxu0 0.0
    %743 = vmatprep.subr.mxu0 0.0
    %744 = vmatpush2.msra.mxu0 0.0
    %745 = vmatprep.mubr.f32.mxu0 0.0
    %746 = vmatmul.mubr.f32.gmra.mxu0 %v87
    %v747 = vpop.f32.mrf.mxu0
    %v748 = vadd.f32 0.0, %v747
    %v749 = vpop.f32.mrf.mxu0
    %v750 = vadd.f32 0.0, %v749
    %751 = vmatprep.mubr.f32.mxu0 0.0
    %752 = vmatmul.mubr.f32.gmra.mxu0 %v90
    %v753 = vpop.f32.mrf.mxu0
    %v754 = vadd.f32 0.0, %v753
    %v755 = vpop.f32.mrf.mxu0
    %v756 = vadd.f32 0.0, %v755
    %757 = vmatprep.mubr.f32.mxu0 0.0
    %758 = vmatmul.mubr.f32.gmra.mxu0 %v93
    %v759 = vpop.f32.mrf.mxu0
    %v760 = vadd.f32 0.0, %v759
    %v761 = vpop.f32.mrf.mxu0
    %v762 = vadd.f32 0.0, %v761
    %763 = vmatprep.mubr.f32.mxu0 0.0
    %764 = vmatmul.mubr.f32.gmra.mxu0 %v96
    %v765 = vpop.f32.mrf.mxu0
    %v766 = vadd.f32 0.0, %v765
    %v767 = vpop.f32.mrf.mxu0
    %v768 = vadd.f32 0.0, %v767
    %769 = vdwg.mxu0
    %770 = vmatprep.subr.mxu0 0.0
    %771 = vmatpush1.msra.mxu0 0.0
    %772 = vmatprep.subr.mxu0 0.0
    %773 = vmatpush1.msra.mxu0 0.0
    %774 = vmatprep.subr.mxu0 0.0
    %775 = vmatpush1.msra.mxu0 0.0
    %776 = vmatprep.subr.mxu0 0.0
    %777 = vmatpush1.msra.mxu0 0.0
    %778 = vmatprep.subr.mxu0 0.0
    %779 = vmatpush1.msra.mxu0 0.0
    %780 = vmatprep.subr.mxu0 0.0
    %781 = vmatpush1.msra.mxu0 0.0
    %782 = vmatprep.subr.mxu0 0.0
    %783 = vmatpush1.msra.mxu0 0.0
    %784 = vmatprep.subr.mxu0 0.0
    %785 = vmatpush1.msra.mxu0 0.0
    %786 = vmatprep.subr.mxu0 0.0
    %787 = vmatpush1.msra.mxu0 0.0
    %788 = vmatprep.subr.mxu0 0.0
    %789 = vmatpush1.msra.mxu0 0.0
    %790 = vmatprep.subr.mxu0 0.0
    %791 = vmatpush1.msra.mxu0 0.0
    %792 = vmatprep.subr.mxu0 0.0
    %793 = vmatpush1.msra.mxu0 0.0
    %794 = vmatprep.subr.mxu0 0.0
    %795 = vmatpush1.msra.mxu0 0.0
    %796 = vmatprep.subr.mxu0 %v145
    %797 = vmatpush1.msra.mxu0 %v142
    %798 = vmatprep.subr.mxu0 %v68
    %799 = vmatpush1.msra.mxu0 %v67
    %800 = vmatprep.subr.mxu0 %v52
    %801 = vmatpush1.msra.mxu0 %v51
    %802 = vmatprep.subr.mxu0 0.0
    %803 = vmatpush2.msra.mxu0 0.0
    %804 = vmatprep.subr.mxu0 0.0
    %805 = vmatpush2.msra.mxu0 0.0
    %806 = vmatprep.subr.mxu0 0.0
    %807 = vmatpush2.msra.mxu0 0.0
    %808 = vmatprep.subr.mxu0 0.0
    %809 = vmatpush2.msra.mxu0 0.0
    %810 = vmatprep.subr.mxu0 0.0
    %811 = vmatpush2.msra.mxu0 0.0
    %812 = vmatprep.subr.mxu0 0.0
    %813 = vmatpush2.msra.mxu0 0.0
    %814 = vmatprep.subr.mxu0 0.0
    %815 = vmatpush2.msra.mxu0 0.0
    %816 = vmatprep.subr.mxu0 0.0
    %817 = vmatpush2.msra.mxu0 0.0
    %818 = vmatprep.subr.mxu0 0.0
    %819 = vmatpush2.msra.mxu0 0.0
    %820 = vmatprep.subr.mxu0 0.0
    %821 = vmatpush2.msra.mxu0 0.0
    %822 = vmatprep.subr.mxu0 0.0
    %823 = vmatpush2.msra.mxu0 0.0
    %824 = vmatprep.subr.mxu0 0.0
    %825 = vmatpush2.msra.mxu0 0.0
    %826 = vmatprep.subr.mxu0 0.0
    %827 = vmatpush2.msra.mxu0 0.0
    %828 = vmatprep.subr.mxu0 0.0
    %829 = vmatpush2.msra.mxu0 0.0
    %830 = vmatprep.subr.mxu0 0.0
    %831 = vmatpush2.msra.mxu0 0.0
    %832 = vmatprep.subr.mxu0 0.0
    %833 = vmatpush2.msra.mxu0 0.0
    %834 = vmatprep.mubr.f32.mxu0 0.0
    %835 = vmatmul.mubr.f32.gmra.mxu0 %v87
    %v836 = vpop.f32.mrf.mxu0
    %v837 = vadd.f32 0.0, %v836
    %v838 = vpop.f32.mrf.mxu0
    %v839 = vadd.f32 0.0, %v838
    %840 = vmatprep.mubr.f32.mxu0 0.0
    %841 = vmatmul.mubr.f32.gmra.mxu0 %v90
    %v842 = vpop.f32.mrf.mxu0
    %v843 = vadd.f32 0.0, %v842
    %v844 = vpop.f32.mrf.mxu0
    %v845 = vadd.f32 0.0, %v844
    %846 = vmatprep.mubr.f32.mxu0 0.0
    %847 = vmatmul.mubr.f32.gmra.mxu0 %v93
    %v848 = vpop.f32.mrf.mxu0
    %v849 = vadd.f32 0.0, %v848
    %v850 = vpop.f32.mrf.mxu0
    %v851 = vadd.f32 0.0, %v850
    %852 = vmatprep.mubr.f32.mxu0 0.0
    %853 = vmatmul.mubr.f32.gmra.mxu0 %v96
    %v854 = vpop.f32.mrf.mxu0
    %v855 = vadd.f32 0.0, %v854
    %v856 = vpop.f32.mrf.mxu0
    %v857 = vadd.f32 0.0, %v856
    %858 = vdwg.mxu0
    %v859 = vmul.f32 %v214, 0.5
    %v860 = vmul.f32 %v216, 0.5
    %v861 = vmul.f32 %v303, 0.5
    %v862 = vmul.f32 %v305, 0.5
    %v863 = vmul.f32 %v392, 0.5
    %v864 = vmul.f32 %v394, 0.5
    %v865 = vmul.f32 %v481, 0.5
    %v866 = vmul.f32 %v483, 0.5
    %v867 = vmul.f32 %v570, 0.5
    %v868 = vmul.f32 %v572, 0.5
    %v869 = vmul.f32 %v659, 0.5
    %v870 = vmul.f32 %v661, 0.5
    %v871 = vmul.f32 %v748, 0.5
    %v872 = vmul.f32 %v750, 0.5
    %v873 = vmul.f32 %v837, 0.5
    %v874 = vmul.f32 %v839, 0.5
    %v875 = vmul.f32 %v220, 0.5
    %v876 = vmul.f32 %v222, 0.5
    %v877 = vmul.f32 %v309, 0.5
    %v878 = vmul.f32 %v311, 0.5
    %v879 = vmul.f32 %v398, 0.5
    %v880 = vmul.f32 %v400, 0.5
    %v881 = vmul.f32 %v487, 0.5
    %v882 = vmul.f32 %v489, 0.5
    %v883 = vmul.f32 %v576, 0.5
    %v884 = vmul.f32 %v578, 0.5
    %v885 = vmul.f32 %v665, 0.5
    %v886 = vmul.f32 %v667, 0.5
    %v887 = vmul.f32 %v754, 0.5
    %v888 = vmul.f32 %v756, 0.5
    %v889 = vmul.f32 %v843, 0.5
    %v890 = vmul.f32 %v845, 0.5
    %v891 = vmul.f32 %v226, 0.5
    %v892 = vmul.f32 %v228, 0.5
    %v893 = vmul.f32 %v315, 0.5
    %v894 = vmul.f32 %v317, 0.5
    %v895 = vmul.f32 %v404, 0.5
    %v896 = vmul.f32 %v406, 0.5
    %v897 = vmul.f32 %v493, 0.5
    %v898 = vmul.f32 %v495, 0.5
    %v899 = vmul.f32 %v582, 0.5
    %v900 = vmul.f32 %v584, 0.5
    %v901 = vmul.f32 %v671, 0.5
    %v902 = vmul.f32 %v673, 0.5
    %v903 = vmul.f32 %v760, 0.5
    %v904 = vmul.f32 %v762, 0.5
    %v905 = vmul.f32 %v849, 0.5
    %v906 = vmul.f32 %v851, 0.5
    %v907 = vmul.f32 %v232, 0.5
    %v908 = vmul.f32 %v234, 0.5
    %v909 = vmul.f32 %v321, 0.5
    %v910 = vmul.f32 %v323, 0.5
    %v911 = vmul.f32 %v410, 0.5
    %v912 = vmul.f32 %v412, 0.5
    %v913 = vmul.f32 %v499, 0.5
    %v914 = vmul.f32 %v501, 0.5
    %v915 = vmul.f32 %v588, 0.5
    %v916 = vmul.f32 %v590, 0.5
    %v917 = vmul.f32 %v677, 0.5
    %v918 = vmul.f32 %v679, 0.5
    %v919 = vmul.f32 %v766, 0.5
    %v920 = vmul.f32 %v768, 0.5
    %v921 = vmul.f32 %v855, 0.5
    %v922 = vmul.f32 %v857, 0.5
    %v923 = vtanh.pop %v859
    %v924 = vtanh.pop %v860
    %v925 = vtanh.pop %v861
    %v926 = vtanh.pop %v862
    %v927 = vtanh.pop %v863
    %v928 = vtanh.pop %v864
    %v929 = vtanh.pop %v865
    %v930 = vtanh.pop %v866
    %v931 = vtanh.pop %v867
    %v932 = vtanh.pop %v868
    %v933 = vtanh.pop %v869
    %v934 = vtanh.pop %v870
    %v935 = vtanh.pop %v871
    %v936 = vtanh.pop %v872
    %v937 = vtanh.pop %v873
    %v938 = vtanh.pop %v874
    %v939 = vtanh.pop %v875
    %v940 = vtanh.pop %v876
    %v941 = vtanh.pop %v877
    %v942 = vtanh.pop %v878
    %v943 = vtanh.pop %v879
    %v944 = vtanh.pop %v880
    %v945 = vtanh.pop %v881
    %v946 = vtanh.pop %v882
    %v947 = vtanh.pop %v883
    %v948 = vtanh.pop %v884
    %v949 = vtanh.pop %v885
    %v950 = vtanh.pop %v886
    %v951 = vtanh.pop %v887
    %v952 = vtanh.pop %v888
    %v953 = vtanh.pop %v889
    %v954 = vtanh.pop %v890
    %v955 = vtanh.pop %v891
    %v956 = vtanh.pop %v892
    %v957 = vtanh.pop %v893
    %v958 = vtanh.pop %v894
    %v959 = vtanh.pop %v895
    %v960 = vtanh.pop %v896
    %v961 = vtanh.pop %v897
    %v962 = vtanh.pop %v898
    %v963 = vtanh.pop %v899
    %v964 = vtanh.pop %v900
    %v965 = vtanh.pop %v901
    %v966 = vtanh.pop %v902
    %v967 = vtanh.pop %v903
    %v968 = vtanh.pop %v904
    %v969 = vtanh.pop %v905
    %v970 = vtanh.pop %v906
    %v971 = vtanh.pop %v907
    %v972 = vtanh.pop %v908
    %v973 = vtanh.pop %v909
    %v974 = vtanh.pop %v910
    %v975 = vtanh.pop %v911
    %v976 = vtanh.pop %v912
    %v977 = vtanh.pop %v913
    %v978 = vtanh.pop %v914
    %v979 = vtanh.pop %v915
    %v980 = vtanh.pop %v916
    %v981 = vtanh.pop %v917
    %v982 = vtanh.pop %v918
    %v983 = vtanh.pop %v919
    %v984 = vtanh.pop %v920
    %v985 = vtanh.pop %v921
    %v986 = vtanh.pop %v922
    %v987 = vmul.f32 %v923, 0.5
    %v988 = vmul.f32 %v924, 0.5
    %v989 = vmul.f32 %v925, 0.5
    %v990 = vmul.f32 %v926, 0.5
    %v991 = vmul.f32 %v927, 0.5
    %v992 = vmul.f32 %v928, 0.5
    %v993 = vmul.f32 %v929, 0.5
    %v994 = vmul.f32 %v930, 0.5
    %v995 = vmul.f32 %v931, 0.5
    %v996 = vmul.f32 %v932, 0.5
    %v997 = vmul.f32 %v933, 0.5
    %v998 = vmul.f32 %v934, 0.5
    %v999 = vmul.f32 %v935, 0.5
    %v1000 = vmul.f32 %v936, 0.5
    %v1001 = vmul.f32 %v937, 0.5
    %v1002 = vmul.f32 %v938, 0.5
    %v1003 = vmul.f32 %v939, 0.5
    %v1004 = vmul.f32 %v940, 0.5
    %v1005 = vmul.f32 %v941, 0.5
    %v1006 = vmul.f32 %v942, 0.5
    %v1007 = vmul.f32 %v943, 0.5
    %v1008 = vmul.f32 %v944, 0.5
    %v1009 = vmul.f32 %v945, 0.5
    %v1010 = vmul.f32 %v946, 0.5
    %v1011 = vmul.f32 %v947, 0.5
    %v1012 = vmul.f32 %v948, 0.5
    %v1013 = vmul.f32 %v949, 0.5
    %v1014 = vmul.f32 %v950, 0.5
    %v1015 = vmul.f32 %v951, 0.5
    %v1016 = vmul.f32 %v952, 0.5
    %v1017 = vmul.f32 %v953, 0.5
    %v1018 = vmul.f32 %v954, 0.5
    %v1019 = vmul.f32 %v955, 0.5
    %v1020 = vmul.f32 %v956, 0.5
    %v1021 = vmul.f32 %v957, 0.5
    %v1022 = vmul.f32 %v958, 0.5
    %v1023 = vmul.f32 %v959, 0.5
    %v1024 = vmul.f32 %v960, 0.5
    %v1025 = vmul.f32 %v961, 0.5
    %v1026 = vmul.f32 %v962, 0.5
    %v1027 = vmul.f32 %v963, 0.5
    %v1028 = vmul.f32 %v964, 0.5
    %v1029 = vmul.f32 %v965, 0.5
    %v1030 = vmul.f32 %v966, 0.5
    %v1031 = vmul.f32 %v967, 0.5
    %v1032 = vmul.f32 %v968, 0.5
    %v1033 = vmul.f32 %v969, 0.5
    %v1034 = vmul.f32 %v970, 0.5
    %v1035 = vmul.f32 %v971, 0.5
    %v1036 = vmul.f32 %v972, 0.5
    %v1037 = vmul.f32 %v973, 0.5
    %v1038 = vmul.f32 %v974, 0.5
    %v1039 = vmul.f32 %v975, 0.5
    %v1040 = vmul.f32 %v976, 0.5
    %v1041 = vmul.f32 %v977, 0.5
    %v1042 = vmul.f32 %v978, 0.5
    %v1043 = vmul.f32 %v979, 0.5
    %v1044 = vmul.f32 %v980, 0.5
    %v1045 = vmul.f32 %v981, 0.5
    %v1046 = vmul.f32 %v982, 0.5
    %v1047 = vmul.f32 %v983, 0.5
    %v1048 = vmul.f32 %v984, 0.5
    %v1049 = vmul.f32 %v985, 0.5
    %v1050 = vmul.f32 %v986, 0.5
    %v1051 = vadd.f32 %v987, 0.5
    %v1052 = vadd.f32 %v988, 0.5
    %v1053 = vadd.f32 %v989, 0.5
    %v1054 = vadd.f32 %v990, 0.5
    %v1055 = vadd.f32 %v991, 0.5
    %v1056 = vadd.f32 %v992, 0.5
    %v1057 = vadd.f32 %v993, 0.5
    %v1058 = vadd.f32 %v994, 0.5
    %v1059 = vadd.f32 %v995, 0.5
    %v1060 = vadd.f32 %v996, 0.5
    %v1061 = vadd.f32 %v997, 0.5
    %v1062 = vadd.f32 %v998, 0.5
    %v1063 = vadd.f32 %v999, 0.5
    %v1064 = vadd.f32 %v1000, 0.5
    %v1065 = vadd.f32 %v1001, 0.5
    %v1066 = vadd.f32 %v1002, 0.5
    %v1067 = vadd.f32 %v1003, 0.5
    %v1068 = vadd.f32 %v1004, 0.5
    %v1069 = vadd.f32 %v1005, 0.5
    %v1070 = vadd.f32 %v1006, 0.5
    %v1071 = vadd.f32 %v1007, 0.5
    %v1072 = vadd.f32 %v1008, 0.5
    %v1073 = vadd.f32 %v1009, 0.5
    %v1074 = vadd.f32 %v1010, 0.5
    %v1075 = vadd.f32 %v1011, 0.5
    %v1076 = vadd.f32 %v1012, 0.5
    %v1077 = vadd.f32 %v1013, 0.5
    %v1078 = vadd.f32 %v1014, 0.5
    %v1079 = vadd.f32 %v1015, 0.5
    %v1080 = vadd.f32 %v1016, 0.5
    %v1081 = vadd.f32 %v1017, 0.5
    %v1082 = vadd.f32 %v1018, 0.5
    %v1083 = vadd.f32 %v1019, 0.5
    %v1084 = vadd.f32 %v1020, 0.5
    %v1085 = vadd.f32 %v1021, 0.5
    %v1086 = vadd.f32 %v1022, 0.5
    %v1087 = vadd.f32 %v1023, 0.5
    %v1088 = vadd.f32 %v1024, 0.5
    %v1089 = vadd.f32 %v1025, 0.5
    %v1090 = vadd.f32 %v1026, 0.5
    %v1091 = vadd.f32 %v1027, 0.5
    %v1092 = vadd.f32 %v1028, 0.5
    %v1093 = vadd.f32 %v1029, 0.5
    %v1094 = vadd.f32 %v1030, 0.5
    %v1095 = vadd.f32 %v1031, 0.5
    %v1096 = vadd.f32 %v1032, 0.5
    %v1097 = vadd.f32 %v1033, 0.5
    %v1098 = vadd.f32 %v1034, 0.5
    %v1099 = vadd.f32 %v1035, 0.5
    %v1100 = vadd.f32 %v1036, 0.5
    %v1101 = vadd.f32 %v1037, 0.5
    %v1102 = vadd.f32 %v1038, 0.5
    %v1103 = vadd.f32 %v1039, 0.5
    %v1104 = vadd.f32 %v1040, 0.5
    %v1105 = vadd.f32 %v1041, 0.5
    %v1106 = vadd.f32 %v1042, 0.5
    %v1107 = vadd.f32 %v1043, 0.5
    %v1108 = vadd.f32 %v1044, 0.5
    %v1109 = vadd.f32 %v1045, 0.5
    %v1110 = vadd.f32 %v1046, 0.5
    %v1111 = vadd.f32 %v1047, 0.5
    %v1112 = vadd.f32 %v1048, 0.5
    %v1113 = vadd.f32 %v1049, 0.5
    %v1114 = vadd.f32 %v1050, 0.5
    %v1115 = vld [vmem:[%s2] sm:$0xff]
    %v1116 = vld [vmem:[%s2 + $0x8] sm:$0xff]
    %v1118 = vrot.slane %v1115, 1
    %vm1119 = vcmask 261120
    %v1120 = vsel %vm1119, %v1118, 0
    %1122 = vmatprep.subr.mxu0 0.0
    %1123 = vmatpush1.msra.mxu0 0.0
    %1124 = vmatprep.subr.mxu0 0.0
    %1125 = vmatpush1.msra.mxu0 0.0
    %1126 = vmatprep.subr.mxu0 0.0
    %1127 = vmatpush1.msra.mxu0 0.0
    %1128 = vmatprep.subr.mxu0 0.0
    %1129 = vmatpush1.msra.mxu0 0.0
    %1130 = vmatprep.subr.mxu0 0.0
    %1131 = vmatpush1.msra.mxu0 0.0
    %1132 = vmatprep.subr.mxu0 0.0
    %1133 = vmatpush1.msra.mxu0 0.0
    %1134 = vmatprep.subr.mxu0 0.0
    %1135 = vmatpush1.msra.mxu0 0.0
    %1136 = vmatprep.subr.mxu0 0.0
    %1137 = vmatpush1.msra.mxu0 0.0
    %1138 = vmatprep.subr.mxu0 0.0
    %1139 = vmatpush1.msra.mxu0 0.0
    %1140 = vmatprep.subr.mxu0 0.0
    %1141 = vmatpush1.msra.mxu0 0.0
    %1142 = vmatprep.subr.mxu0 0.0
    %1143 = vmatpush1.msra.mxu0 0.0
    %1144 = vmatprep.subr.mxu0 0.0
    %1145 = vmatpush1.msra.mxu0 0.0
    %1146 = vmatprep.subr.mxu0 0.0
    %1147 = vmatpush1.msra.mxu0 %v1100
    %1148 = vmatprep.subr.mxu0 0.0
    %1149 = vmatpush1.msra.mxu0 %v1084
    %1150 = vmatprep.subr.mxu0 0.0
    %1151 = vmatpush1.msra.mxu0 %v1068
    %1152 = vmatprep.subr.mxu0 0.0
    %1153 = vmatpush1.msra.mxu0 %v1052
    %1154 = vmatprep.subr.mxu0 0.0
    %1155 = vmatpush2.msra.mxu0 0.0
    %1156 = vmatprep.subr.mxu0 0.0
    %1157 = vmatpush2.msra.mxu0 0.0
    %1158 = vmatprep.subr.mxu0 0.0
    %1159 = vmatpush2.msra.mxu0 0.0
    %1160 = vmatprep.subr.mxu0 0.0
    %1161 = vmatpush2.msra.mxu0 0.0
    %1162 = vmatprep.subr.mxu0 0.0
    %1163 = vmatpush2.msra.mxu0 0.0
    %1164 = vmatprep.subr.mxu0 0.0
    %1165 = vmatpush2.msra.mxu0 0.0
    %1166 = vmatprep.subr.mxu0 0.0
    %1167 = vmatpush2.msra.mxu0 0.0
    %1168 = vmatprep.subr.mxu0 0.0
    %1169 = vmatpush2.msra.mxu0 0.0
    %1170 = vmatprep.subr.mxu0 0.0
    %1171 = vmatpush2.msra.mxu0 0.0
    %1172 = vmatprep.subr.mxu0 0.0
    %1173 = vmatpush2.msra.mxu0 0.0
    %1174 = vmatprep.subr.mxu0 0.0
    %1175 = vmatpush2.msra.mxu0 0.0
    %1176 = vmatprep.subr.mxu0 0.0
    %1177 = vmatpush2.msra.mxu0 0.0
    %1178 = vmatprep.subr.mxu0 0.0
    %1179 = vmatpush2.msra.mxu0 0.0
    %1180 = vmatprep.subr.mxu0 0.0
    %1181 = vmatpush2.msra.mxu0 0.0
    %1182 = vmatprep.subr.mxu0 0.0
    %1183 = vmatpush2.msra.mxu0 0.0
    %1184 = vmatprep.subr.mxu0 0.0
    %1185 = vmatpush2.msra.mxu0 0.0
    %1186 = vmatprep.mubr.f32.mxu0 0.0
    %1187 = vmatmul.mubr.f32.gmra.mxu0 %v1120
    %v1188 = vpop.f32.mrf.mxu0
    %v1189 = vadd.f32 0.0, %v1188
    %v1190 = vpop.f32.mrf.mxu0
    %1191 = vdwg.mxu0
    %v1192 = vsel %vm1119, %v1115, 0
    %1194 = vmatprep.subr.mxu0 0.0
    %1195 = vmatpush1.msra.mxu0 0.0
    %1196 = vmatprep.subr.mxu0 0.0
    %1197 = vmatpush1.msra.mxu0 0.0
    %1198 = vmatprep.subr.mxu0 0.0
    %1199 = vmatpush1.msra.mxu0 0.0
    %1200 = vmatprep.subr.mxu0 0.0
    %1201 = vmatpush1.msra.mxu0 0.0
    %1202 = vmatprep.subr.mxu0 0.0
    %1203 = vmatpush1.msra.mxu0 0.0
    %1204 = vmatprep.subr.mxu0 0.0
    %1205 = vmatpush1.msra.mxu0 0.0
    %1206 = vmatprep.subr.mxu0 0.0
    %1207 = vmatpush1.msra.mxu0 0.0
    %1208 = vmatprep.subr.mxu0 0.0
    %1209 = vmatpush1.msra.mxu0 0.0
    %1210 = vmatprep.subr.mxu0 0.0
    %1211 = vmatpush1.msra.mxu0 0.0
    %1212 = vmatprep.subr.mxu0 0.0
    %1213 = vmatpush1.msra.mxu0 0.0
    %1214 = vmatprep.subr.mxu0 0.0
    %1215 = vmatpush1.msra.mxu0 0.0
    %1216 = vmatprep.subr.mxu0 0.0
    %1217 = vmatpush1.msra.mxu0 0.0
    %1218 = vmatprep.subr.mxu0 0.0
    %1219 = vmatpush1.msra.mxu0 %v1099
    %1220 = vmatprep.subr.mxu0 0.0
    %1221 = vmatpush1.msra.mxu0 %v1083
    %1222 = vmatprep.subr.mxu0 0.0
    %1223 = vmatpush1.msra.mxu0 %v1067
    %1224 = vmatprep.subr.mxu0 0.0
    %1225 = vmatpush1.msra.mxu0 %v1051
    %1226 = vmatprep.subr.mxu0 0.0
    %1227 = vmatpush2.msra.mxu0 0.0
    %1228 = vmatprep.subr.mxu0 0.0
    %1229 = vmatpush2.msra.mxu0 0.0
    %1230 = vmatprep.subr.mxu0 0.0
    %1231 = vmatpush2.msra.mxu0 0.0
    %1232 = vmatprep.subr.mxu0 0.0
    %1233 = vmatpush2.msra.mxu0 0.0
    %1234 = vmatprep.subr.mxu0 0.0
    %1235 = vmatpush2.msra.mxu0 0.0
    %1236 = vmatprep.subr.mxu0 0.0
    %1237 = vmatpush2.msra.mxu0 0.0
    %1238 = vmatprep.subr.mxu0 0.0
    %1239 = vmatpush2.msra.mxu0 0.0
    %1240 = vmatprep.subr.mxu0 0.0
    %1241 = vmatpush2.msra.mxu0 0.0
    %1242 = vmatprep.subr.mxu0 0.0
    %1243 = vmatpush2.msra.mxu0 0.0
    %1244 = vmatprep.subr.mxu0 0.0
    %1245 = vmatpush2.msra.mxu0 0.0
    %1246 = vmatprep.subr.mxu0 0.0
    %1247 = vmatpush2.msra.mxu0 0.0
    %1248 = vmatprep.subr.mxu0 0.0
    %1249 = vmatpush2.msra.mxu0 0.0
    %1250 = vmatprep.subr.mxu0 0.0
    %1251 = vmatpush2.msra.mxu0 0.0
    %1252 = vmatprep.subr.mxu0 0.0
    %1253 = vmatpush2.msra.mxu0 0.0
    %1254 = vmatprep.subr.mxu0 0.0
    %1255 = vmatpush2.msra.mxu0 0.0
    %1256 = vmatprep.subr.mxu0 0.0
    %1257 = vmatpush2.msra.mxu0 0.0
    %1258 = vmatprep.mubr.f32.mxu0 0.0
    %1259 = vmatmul.mubr.f32.gmra.mxu0 %v1192
    %v1260 = vpop.f32.mrf.mxu0
    %v1261 = vadd.f32 %v1189, %v1260
    %v1262 = vpop.f32.mrf.mxu0
    %1263 = vdwg.mxu0
    %v1264 = vrot.slane %v1115, 2
    %v1265 = vsel %vm1119, %v1264, 0
    %1267 = vmatprep.subr.mxu0 0.0
    %1268 = vmatpush1.msra.mxu0 0.0
    %1269 = vmatprep.subr.mxu0 0.0
    %1270 = vmatpush1.msra.mxu0 0.0
    %1271 = vmatprep.subr.mxu0 0.0
    %1272 = vmatpush1.msra.mxu0 0.0
    %1273 = vmatprep.subr.mxu0 0.0
    %1274 = vmatpush1.msra.mxu0 0.0
    %1275 = vmatprep.subr.mxu0 0.0
    %1276 = vmatpush1.msra.mxu0 0.0
    %1277 = vmatprep.subr.mxu0 0.0
    %1278 = vmatpush1.msra.mxu0 0.0
    %1279 = vmatprep.subr.mxu0 0.0
    %1280 = vmatpush1.msra.mxu0 0.0
    %1281 = vmatprep.subr.mxu0 0.0
    %1282 = vmatpush1.msra.mxu0 0.0
    %1283 = vmatprep.subr.mxu0 0.0
    %1284 = vmatpush1.msra.mxu0 0.0
    %1285 = vmatprep.subr.mxu0 0.0
    %1286 = vmatpush1.msra.mxu0 0.0
    %1287 = vmatprep.subr.mxu0 0.0
    %1288 = vmatpush1.msra.mxu0 0.0
    %1289 = vmatprep.subr.mxu0 0.0
    %1290 = vmatpush1.msra.mxu0 0.0
    %1291 = vmatprep.subr.mxu0 0.0
    %1292 = vmatpush1.msra.mxu0 %v1101
    %1293 = vmatprep.subr.mxu0 0.0
    %1294 = vmatpush1.msra.mxu0 %v1085
    %1295 = vmatprep.subr.mxu0 0.0
    %1296 = vmatpush1.msra.mxu0 %v1069
    %1297 = vmatprep.subr.mxu0 0.0
    %1298 = vmatpush1.msra.mxu0 %v1053
    %1299 = vmatprep.subr.mxu0 0.0
    %1300 = vmatpush2.msra.mxu0 0.0
    %1301 = vmatprep.subr.mxu0 0.0
    %1302 = vmatpush2.msra.mxu0 0.0
    %1303 = vmatprep.subr.mxu0 0.0
    %1304 = vmatpush2.msra.mxu0 0.0
    %1305 = vmatprep.subr.mxu0 0.0
    %1306 = vmatpush2.msra.mxu0 0.0
    %1307 = vmatprep.subr.mxu0 0.0
    %1308 = vmatpush2.msra.mxu0 0.0
    %1309 = vmatprep.subr.mxu0 0.0
    %1310 = vmatpush2.msra.mxu0 0.0
    %1311 = vmatprep.subr.mxu0 0.0
    %1312 = vmatpush2.msra.mxu0 0.0
    %1313 = vmatprep.subr.mxu0 0.0
    %1314 = vmatpush2.msra.mxu0 0.0
    %1315 = vmatprep.subr.mxu0 0.0
    %1316 = vmatpush2.msra.mxu0 0.0
    %1317 = vmatprep.subr.mxu0 0.0
    %1318 = vmatpush2.msra.mxu0 0.0
    %1319 = vmatprep.subr.mxu0 0.0
    %1320 = vmatpush2.msra.mxu0 0.0
    %1321 = vmatprep.subr.mxu0 0.0
    %1322 = vmatpush2.msra.mxu0 0.0
    %1323 = vmatprep.subr.mxu0 0.0
    %1324 = vmatpush2.msra.mxu0 0.0
    %1325 = vmatprep.subr.mxu0 0.0
    %1326 = vmatpush2.msra.mxu0 0.0
    %1327 = vmatprep.subr.mxu0 0.0
    %1328 = vmatpush2.msra.mxu0 0.0
    %1329 = vmatprep.subr.mxu0 0.0
    %1330 = vmatpush2.msra.mxu0 0.0
    %1331 = vmatprep.mubr.f32.mxu0 0.0
    %1332 = vmatmul.mubr.f32.gmra.mxu0 %v1265
    %v1333 = vpop.f32.mrf.mxu0
    %v1334 = vadd.f32 0.0, %v1333
    %v1335 = vpop.f32.mrf.mxu0
    %1336 = vdwg.mxu0
    %v1337 = vadd.f32 %v1261, %v1334
    %v1338 = vrot.slane %v1115, 3
    %v1339 = vsel %vm1119, %v1338, 0
    %1341 = vmatprep.subr.mxu0 0.0
    %1342 = vmatpush1.msra.mxu0 0.0
    %1343 = vmatprep.subr.mxu0 0.0
    %1344 = vmatpush1.msra.mxu0 0.0
    %1345 = vmatprep.subr.mxu0 0.0
    %1346 = vmatpush1.msra.mxu0 0.0
    %1347 = vmatprep.subr.mxu0 0.0
    %1348 = vmatpush1.msra.mxu0 0.0
    %1349 = vmatprep.subr.mxu0 0.0
    %1350 = vmatpush1.msra.mxu0 0.0
    %1351 = vmatprep.subr.mxu0 0.0
    %1352 = vmatpush1.msra.mxu0 0.0
    %1353 = vmatprep.subr.mxu0 0.0
    %1354 = vmatpush1.msra.mxu0 0.0
    %1355 = vmatprep.subr.mxu0 0.0
    %1356 = vmatpush1.msra.mxu0 0.0
    %1357 = vmatprep.subr.mxu0 0.0
    %1358 = vmatpush1.msra.mxu0 0.0
    %1359 = vmatprep.subr.mxu0 0.0
    %1360 = vmatpush1.msra.mxu0 0.0
    %1361 = vmatprep.subr.mxu0 0.0
    %1362 = vmatpush1.msra.mxu0 0.0
    %1363 = vmatprep.subr.mxu0 0.0
    %1364 = vmatpush1.msra.mxu0 0.0
    %1365 = vmatprep.subr.mxu0 0.0
    %1366 = vmatpush1.msra.mxu0 %v1102
    %1367 = vmatprep.subr.mxu0 0.0
    %1368 = vmatpush1.msra.mxu0 %v1086
    %1369 = vmatprep.subr.mxu0 0.0
    %1370 = vmatpush1.msra.mxu0 %v1070
    %1371 = vmatprep.subr.mxu0 0.0
    %1372 = vmatpush1.msra.mxu0 %v1054
    %1373 = vmatprep.subr.mxu0 0.0
    %1374 = vmatpush2.msra.mxu0 0.0
    %1375 = vmatprep.subr.mxu0 0.0
    %1376 = vmatpush2.msra.mxu0 0.0
    %1377 = vmatprep.subr.mxu0 0.0
    %1378 = vmatpush2.msra.mxu0 0.0
    %1379 = vmatprep.subr.mxu0 0.0
    %1380 = vmatpush2.msra.mxu0 0.0
    %1381 = vmatprep.subr.mxu0 0.0
    %1382 = vmatpush2.msra.mxu0 0.0
    %1383 = vmatprep.subr.mxu0 0.0
    %1384 = vmatpush2.msra.mxu0 0.0
    %1385 = vmatprep.subr.mxu0 0.0
    %1386 = vmatpush2.msra.mxu0 0.0
    %1387 = vmatprep.subr.mxu0 0.0
    %1388 = vmatpush2.msra.mxu0 0.0
    %1389 = vmatprep.subr.mxu0 0.0
    %1390 = vmatpush2.msra.mxu0 0.0
    %1391 = vmatprep.subr.mxu0 0.0
    %1392 = vmatpush2.msra.mxu0 0.0
    %1393 = vmatprep.subr.mxu0 0.0
    %1394 = vmatpush2.msra.mxu0 0.0
    %1395 = vmatprep.subr.mxu0 0.0
    %1396 = vmatpush2.msra.mxu0 0.0
    %1397 = vmatprep.subr.mxu0 0.0
    %1398 = vmatpush2.msra.mxu0 0.0
    %1399 = vmatprep.subr.mxu0 0.0
    %1400 = vmatpush2.msra.mxu0 0.0
    %1401 = vmatprep.subr.mxu0 0.0
    %1402 = vmatpush2.msra.mxu0 0.0
    %1403 = vmatprep.subr.mxu0 0.0
    %1404 = vmatpush2.msra.mxu0 0.0
    %1405 = vmatprep.mubr.f32.mxu0 0.0
    %1406 = vmatmul.mubr.f32.gmra.mxu0 %v1339
    %v1407 = vpop.f32.mrf.mxu0
    %v1408 = vadd.f32 0.0, %v1407
    %v1409 = vpop.f32.mrf.mxu0
    %1410 = vdwg.mxu0
    %v1411 = vadd.f32 %v1337, %v1408
    %v1412 = vrot.slane %v1115, 4
    %v1413 = vsel %vm1119, %v1412, 0
    %1415 = vmatprep.subr.mxu0 0.0
    %1416 = vmatpush1.msra.mxu0 0.0
    %1417 = vmatprep.subr.mxu0 0.0
    %1418 = vmatpush1.msra.mxu0 0.0
    %1419 = vmatprep.subr.mxu0 0.0
    %1420 = vmatpush1.msra.mxu0 0.0
    %1421 = vmatprep.subr.mxu0 0.0
    %1422 = vmatpush1.msra.mxu0 0.0
    %1423 = vmatprep.subr.mxu0 0.0
    %1424 = vmatpush1.msra.mxu0 0.0
    %1425 = vmatprep.subr.mxu0 0.0
    %1426 = vmatpush1.msra.mxu0 0.0
    %1427 = vmatprep.subr.mxu0 0.0
    %1428 = vmatpush1.msra.mxu0 0.0
    %1429 = vmatprep.subr.mxu0 0.0
    %1430 = vmatpush1.msra.mxu0 0.0
    %1431 = vmatprep.subr.mxu0 0.0
    %1432 = vmatpush1.msra.mxu0 0.0
    %1433 = vmatprep.subr.mxu0 0.0
    %1434 = vmatpush1.msra.mxu0 0.0
    %1435 = vmatprep.subr.mxu0 0.0
    %1436 = vmatpush1.msra.mxu0 0.0
    %1437 = vmatprep.subr.mxu0 0.0
    %1438 = vmatpush1.msra.mxu0 0.0
    %1439 = vmatprep.subr.mxu0 0.0
    %1440 = vmatpush1.msra.mxu0 %v1103
    %1441 = vmatprep.subr.mxu0 0.0
    %1442 = vmatpush1.msra.mxu0 %v1087
    %1443 = vmatprep.subr.mxu0 0.0
    %1444 = vmatpush1.msra.mxu0 %v1071
    %1445 = vmatprep.subr.mxu0 0.0
    %1446 = vmatpush1.msra.mxu0 %v1055
    %1447 = vmatprep.subr.mxu0 0.0
    %1448 = vmatpush2.msra.mxu0 0.0
    %1449 = vmatprep.subr.mxu0 0.0
    %1450 = vmatpush2.msra.mxu0 0.0
    %1451 = vmatprep.subr.mxu0 0.0
    %1452 = vmatpush2.msra.mxu0 0.0
    %1453 = vmatprep.subr.mxu0 0.0
    %1454 = vmatpush2.msra.mxu0 0.0
    %1455 = vmatprep.subr.mxu0 0.0
    %1456 = vmatpush2.msra.mxu0 0.0
    %1457 = vmatprep.subr.mxu0 0.0
    %1458 = vmatpush2.msra.mxu0 0.0
    %1459 = vmatprep.subr.mxu0 0.0
    %1460 = vmatpush2.msra.mxu0 0.0
    %1461 = vmatprep.subr.mxu0 0.0
    %1462 = vmatpush2.msra.mxu0 0.0
    %1463 = vmatprep.subr.mxu0 0.0
    %1464 = vmatpush2.msra.mxu0 0.0
    %1465 = vmatprep.subr.mxu0 0.0
    %1466 = vmatpush2.msra.mxu0 0.0
    %1467 = vmatprep.subr.mxu0 0.0
    %1468 = vmatpush2.msra.mxu0 0.0
    %1469 = vmatprep.subr.mxu0 0.0
    %1470 = vmatpush2.msra.mxu0 0.0
    %1471 = vmatprep.subr.mxu0 0.0
    %1472 = vmatpush2.msra.mxu0 0.0
    %1473 = vmatprep.subr.mxu0 0.0
    %1474 = vmatpush2.msra.mxu0 0.0
    %1475 = vmatprep.subr.mxu0 0.0
    %1476 = vmatpush2.msra.mxu0 0.0
    %1477 = vmatprep.subr.mxu0 0.0
    %1478 = vmatpush2.msra.mxu0 0.0
    %1479 = vmatprep.mubr.f32.mxu0 0.0
    %1480 = vmatmul.mubr.f32.gmra.mxu0 %v1413
    %v1481 = vpop.f32.mrf.mxu0
    %v1482 = vadd.f32 0.0, %v1481
    %v1483 = vpop.f32.mrf.mxu0
    %1484 = vdwg.mxu0
    %v1485 = vadd.f32 %v1411, %v1482
    %v1486 = vrot.slane %v1115, 5
    %v1487 = vsel %vm1119, %v1486, 0
    %1489 = vmatprep.subr.mxu0 0.0
    %1490 = vmatpush1.msra.mxu0 0.0
    %1491 = vmatprep.subr.mxu0 0.0
    %1492 = vmatpush1.msra.mxu0 0.0
    %1493 = vmatprep.subr.mxu0 0.0
    %1494 = vmatpush1.msra.mxu0 0.0
    %1495 = vmatprep.subr.mxu0 0.0
    %1496 = vmatpush1.msra.mxu0 0.0
    %1497 = vmatprep.subr.mxu0 0.0
    %1498 = vmatpush1.msra.mxu0 0.0
    %1499 = vmatprep.subr.mxu0 0.0
    %1500 = vmatpush1.msra.mxu0 0.0
    %1501 = vmatprep.subr.mxu0 0.0
    %1502 = vmatpush1.msra.mxu0 0.0
    %1503 = vmatprep.subr.mxu0 0.0
    %1504 = vmatpush1.msra.mxu0 0.0
    %1505 = vmatprep.subr.mxu0 0.0
    %1506 = vmatpush1.msra.mxu0 0.0
    %1507 = vmatprep.subr.mxu0 0.0
    %1508 = vmatpush1.msra.mxu0 0.0
    %1509 = vmatprep.subr.mxu0 0.0
    %1510 = vmatpush1.msra.mxu0 0.0
    %1511 = vmatprep.subr.mxu0 0.0
    %1512 = vmatpush1.msra.mxu0 0.0
    %1513 = vmatprep.subr.mxu0 0.0
    %1514 = vmatpush1.msra.mxu0 %v1104
    %1515 = vmatprep.subr.mxu0 0.0
    %1516 = vmatpush1.msra.mxu0 %v1088
    %1517 = vmatprep.subr.mxu0 0.0
    %1518 = vmatpush1.msra.mxu0 %v1072
    %1519 = vmatprep.subr.mxu0 0.0
    %1520 = vmatpush1.msra.mxu0 %v1056
    %1521 = vmatprep.subr.mxu0 0.0
    %1522 = vmatpush2.msra.mxu0 0.0
    %1523 = vmatprep.subr.mxu0 0.0
    %1524 = vmatpush2.msra.mxu0 0.0
    %1525 = vmatprep.subr.mxu0 0.0
    %1526 = vmatpush2.msra.mxu0 0.0
    %1527 = vmatprep.subr.mxu0 0.0
    %1528 = vmatpush2.msra.mxu0 0.0
    %1529 = vmatprep.subr.mxu0 0.0
    %1530 = vmatpush2.msra.mxu0 0.0
    %1531 = vmatprep.subr.mxu0 0.0
    %1532 = vmatpush2.msra.mxu0 0.0
    %1533 = vmatprep.subr.mxu0 0.0
    %1534 = vmatpush2.msra.mxu0 0.0
    %1535 = vmatprep.subr.mxu0 0.0
    %1536 = vmatpush2.msra.mxu0 0.0
    %1537 = vmatprep.subr.mxu0 0.0
    %1538 = vmatpush2.msra.mxu0 0.0
    %1539 = vmatprep.subr.mxu0 0.0
    %1540 = vmatpush2.msra.mxu0 0.0
    %1541 = vmatprep.subr.mxu0 0.0
    %1542 = vmatpush2.msra.mxu0 0.0
    %1543 = vmatprep.subr.mxu0 0.0
    %1544 = vmatpush2.msra.mxu0 0.0
    %1545 = vmatprep.subr.mxu0 0.0
    %1546 = vmatpush2.msra.mxu0 0.0
    %1547 = vmatprep.subr.mxu0 0.0
    %1548 = vmatpush2.msra.mxu0 0.0
    %1549 = vmatprep.subr.mxu0 0.0
    %1550 = vmatpush2.msra.mxu0 0.0
    %1551 = vmatprep.subr.mxu0 0.0
    %1552 = vmatpush2.msra.mxu0 0.0
    %1553 = vmatprep.mubr.f32.mxu0 0.0
    %1554 = vmatmul.mubr.f32.gmra.mxu0 %v1487
    %v1555 = vpop.f32.mrf.mxu0
    %v1556 = vadd.f32 0.0, %v1555
    %v1557 = vpop.f32.mrf.mxu0
    %1558 = vdwg.mxu0
    %v1559 = vadd.f32 %v1485, %v1556
    %v1560 = vrot.slane %v1115, 6
    %v1561 = vsel %vm1119, %v1560, 0
    %1563 = vmatprep.subr.mxu0 0.0
    %1564 = vmatpush1.msra.mxu0 0.0
    %1565 = vmatprep.subr.mxu0 0.0
    %1566 = vmatpush1.msra.mxu0 0.0
    %1567 = vmatprep.subr.mxu0 0.0
    %1568 = vmatpush1.msra.mxu0 0.0
    %1569 = vmatprep.subr.mxu0 0.0
    %1570 = vmatpush1.msra.mxu0 0.0
    %1571 = vmatprep.subr.mxu0 0.0
    %1572 = vmatpush1.msra.mxu0 0.0
    %1573 = vmatprep.subr.mxu0 0.0
    %1574 = vmatpush1.msra.mxu0 0.0
    %1575 = vmatprep.subr.mxu0 0.0
    %1576 = vmatpush1.msra.mxu0 0.0
    %1577 = vmatprep.subr.mxu0 0.0
    %1578 = vmatpush1.msra.mxu0 0.0
    %1579 = vmatprep.subr.mxu0 0.0
    %1580 = vmatpush1.msra.mxu0 0.0
    %1581 = vmatprep.subr.mxu0 0.0
    %1582 = vmatpush1.msra.mxu0 0.0
    %1583 = vmatprep.subr.mxu0 0.0
    %1584 = vmatpush1.msra.mxu0 0.0
    %1585 = vmatprep.subr.mxu0 0.0
    %1586 = vmatpush1.msra.mxu0 0.0
    %1587 = vmatprep.subr.mxu0 0.0
    %1588 = vmatpush1.msra.mxu0 %v1105
    %1589 = vmatprep.subr.mxu0 0.0
    %1590 = vmatpush1.msra.mxu0 %v1089
    %1591 = vmatprep.subr.mxu0 0.0
    %1592 = vmatpush1.msra.mxu0 %v1073
    %1593 = vmatprep.subr.mxu0 0.0
    %1594 = vmatpush1.msra.mxu0 %v1057
    %1595 = vmatprep.subr.mxu0 0.0
    %1596 = vmatpush2.msra.mxu0 0.0
    %1597 = vmatprep.subr.mxu0 0.0
    %1598 = vmatpush2.msra.mxu0 0.0
    %1599 = vmatprep.subr.mxu0 0.0
    %1600 = vmatpush2.msra.mxu0 0.0
    %1601 = vmatprep.subr.mxu0 0.0
    %1602 = vmatpush2.msra.mxu0 0.0
    %1603 = vmatprep.subr.mxu0 0.0
    %1604 = vmatpush2.msra.mxu0 0.0
    %1605 = vmatprep.subr.mxu0 0.0
    %1606 = vmatpush2.msra.mxu0 0.0
    %1607 = vmatprep.subr.mxu0 0.0
    %1608 = vmatpush2.msra.mxu0 0.0
    %1609 = vmatprep.subr.mxu0 0.0
    %1610 = vmatpush2.msra.mxu0 0.0
    %1611 = vmatprep.subr.mxu0 0.0
    %1612 = vmatpush2.msra.mxu0 0.0
    %1613 = vmatprep.subr.mxu0 0.0
    %1614 = vmatpush2.msra.mxu0 0.0
    %1615 = vmatprep.subr.mxu0 0.0
    %1616 = vmatpush2.msra.mxu0 0.0
    %1617 = vmatprep.subr.mxu0 0.0
    %1618 = vmatpush2.msra.mxu0 0.0
    %1619 = vmatprep.subr.mxu0 0.0
    %1620 = vmatpush2.msra.mxu0 0.0
    %1621 = vmatprep.subr.mxu0 0.0
    %1622 = vmatpush2.msra.mxu0 0.0
    %1623 = vmatprep.subr.mxu0 0.0
    %1624 = vmatpush2.msra.mxu0 0.0
    %1625 = vmatprep.subr.mxu0 0.0
    %1626 = vmatpush2.msra.mxu0 0.0
    %1627 = vmatprep.mubr.f32.mxu0 0.0
    %1628 = vmatmul.mubr.f32.gmra.mxu0 %v1561
    %v1629 = vpop.f32.mrf.mxu0
    %v1630 = vadd.f32 0.0, %v1629
    %v1631 = vpop.f32.mrf.mxu0
    %1632 = vdwg.mxu0
    %v1633 = vadd.f32 %v1559, %v1630
    %v1634 = vrot.slane %v1115, 7
    %v1635 = vsel %vm1119, %v1634, 0
    %1637 = vmatprep.subr.mxu0 0.0
    %1638 = vmatpush1.msra.mxu0 0.0
    %1639 = vmatprep.subr.mxu0 0.0
    %1640 = vmatpush1.msra.mxu0 0.0
    %1641 = vmatprep.subr.mxu0 0.0
    %1642 = vmatpush1.msra.mxu0 0.0
    %1643 = vmatprep.subr.mxu0 0.0
    %1644 = vmatpush1.msra.mxu0 0.0
    %1645 = vmatprep.subr.mxu0 0.0
    %1646 = vmatpush1.msra.mxu0 0.0
    %1647 = vmatprep.subr.mxu0 0.0
    %1648 = vmatpush1.msra.mxu0 0.0
    %1649 = vmatprep.subr.mxu0 0.0
    %1650 = vmatpush1.msra.mxu0 0.0
    %1651 = vmatprep.subr.mxu0 0.0
    %1652 = vmatpush1.msra.mxu0 0.0
    %1653 = vmatprep.subr.mxu0 0.0
    %1654 = vmatpush1.msra.mxu0 0.0
    %1655 = vmatprep.subr.mxu0 0.0
    %1656 = vmatpush1.msra.mxu0 0.0
    %1657 = vmatprep.subr.mxu0 0.0
    %1658 = vmatpush1.msra.mxu0 0.0
    %1659 = vmatprep.subr.mxu0 0.0
    %1660 = vmatpush1.msra.mxu0 0.0
    %1661 = vmatprep.subr.mxu0 0.0
    %1662 = vmatpush1.msra.mxu0 %v1106
    %1663 = vmatprep.subr.mxu0 0.0
    %1664 = vmatpush1.msra.mxu0 %v1090
    %1665 = vmatprep.subr.mxu0 0.0
    %1666 = vmatpush1.msra.mxu0 %v1074
    %1667 = vmatprep.subr.mxu0 0.0
    %1668 = vmatpush1.msra.mxu0 %v1058
    %1669 = vmatprep.subr.mxu0 0.0
    %1670 = vmatpush2.msra.mxu0 0.0
    %1671 = vmatprep.subr.mxu0 0.0
    %1672 = vmatpush2.msra.mxu0 0.0
    %1673 = vmatprep.subr.mxu0 0.0
    %1674 = vmatpush2.msra.mxu0 0.0
    %1675 = vmatprep.subr.mxu0 0.0
    %1676 = vmatpush2.msra.mxu0 0.0
    %1677 = vmatprep.subr.mxu0 0.0
    %1678 = vmatpush2.msra.mxu0 0.0
    %1679 = vmatprep.subr.mxu0 0.0
    %1680 = vmatpush2.msra.mxu0 0.0
    %1681 = vmatprep.subr.mxu0 0.0
    %1682 = vmatpush2.msra.mxu0 0.0
    %1683 = vmatprep.subr.mxu0 0.0
    %1684 = vmatpush2.msra.mxu0 0.0
    %1685 = vmatprep.subr.mxu0 0.0
    %1686 = vmatpush2.msra.mxu0 0.0
    %1687 = vmatprep.subr.mxu0 0.0
    %1688 = vmatpush2.msra.mxu0 0.0
    %1689 = vmatprep.subr.mxu0 0.0
    %1690 = vmatpush2.msra.mxu0 0.0
    %1691 = vmatprep.subr.mxu0 0.0
    %1692 = vmatpush2.msra.mxu0 0.0
    %1693 = vmatprep.subr.mxu0 0.0
    %1694 = vmatpush2.msra.mxu0 0.0
    %1695 = vmatprep.subr.mxu0 0.0
    %1696 = vmatpush2.msra.mxu0 0.0
    %1697 = vmatprep.subr.mxu0 0.0
    %1698 = vmatpush2.msra.mxu0 0.0
    %1699 = vmatprep.subr.mxu0 0.0
    %1700 = vmatpush2.msra.mxu0 0.0
    %1701 = vmatprep.mubr.f32.mxu0 0.0
    %1702 = vmatmul.mubr.f32.gmra.mxu0 %v1635
    %v1703 = vpop.f32.mrf.mxu0
    %v1704 = vadd.f32 0.0, %v1703
    %v1705 = vpop.f32.mrf.mxu0
    %1706 = vdwg.mxu0
    %v1707 = vadd.f32 %v1633, %v1704
    %v1709 = vsel %vm1119, %v1116, 0
    %1711 = vmatprep.subr.mxu0 0.0
    %1712 = vmatpush1.msra.mxu0 0.0
    %1713 = vmatprep.subr.mxu0 0.0
    %1714 = vmatpush1.msra.mxu0 0.0
    %1715 = vmatprep.subr.mxu0 0.0
    %1716 = vmatpush1.msra.mxu0 0.0
    %1717 = vmatprep.subr.mxu0 0.0
    %1718 = vmatpush1.msra.mxu0 0.0
    %1719 = vmatprep.subr.mxu0 0.0
    %1720 = vmatpush1.msra.mxu0 0.0
    %1721 = vmatprep.subr.mxu0 0.0
    %1722 = vmatpush1.msra.mxu0 0.0
    %1723 = vmatprep.subr.mxu0 0.0
    %1724 = vmatpush1.msra.mxu0 0.0
    %1725 = vmatprep.subr.mxu0 0.0
    %1726 = vmatpush1.msra.mxu0 0.0
    %1727 = vmatprep.subr.mxu0 0.0
    %1728 = vmatpush1.msra.mxu0 0.0
    %1729 = vmatprep.subr.mxu0 0.0
    %1730 = vmatpush1.msra.mxu0 0.0
    %1731 = vmatprep.subr.mxu0 0.0
    %1732 = vmatpush1.msra.mxu0 0.0
    %1733 = vmatprep.subr.mxu0 0.0
    %1734 = vmatpush1.msra.mxu0 0.0
    %1735 = vmatprep.subr.mxu0 0.0
    %1736 = vmatpush1.msra.mxu0 %v1107
    %1737 = vmatprep.subr.mxu0 0.0
    %1738 = vmatpush1.msra.mxu0 %v1091
    %1739 = vmatprep.subr.mxu0 0.0
    %1740 = vmatpush1.msra.mxu0 %v1075
    %1741 = vmatprep.subr.mxu0 0.0
    %1742 = vmatpush1.msra.mxu0 %v1059
    %1743 = vmatprep.subr.mxu0 0.0
    %1744 = vmatpush2.msra.mxu0 0.0
    %1745 = vmatprep.subr.mxu0 0.0
    %1746 = vmatpush2.msra.mxu0 0.0
    %1747 = vmatprep.subr.mxu0 0.0
    %1748 = vmatpush2.msra.mxu0 0.0
    %1749 = vmatprep.subr.mxu0 0.0
    %1750 = vmatpush2.msra.mxu0 0.0
    %1751 = vmatprep.subr.mxu0 0.0
    %1752 = vmatpush2.msra.mxu0 0.0
    %1753 = vmatprep.subr.mxu0 0.0
    %1754 = vmatpush2.msra.mxu0 0.0
    %1755 = vmatprep.subr.mxu0 0.0
    %1756 = vmatpush2.msra.mxu0 0.0
    %1757 = vmatprep.subr.mxu0 0.0
    %1758 = vmatpush2.msra.mxu0 0.0
    %1759 = vmatprep.subr.mxu0 0.0
    %1760 = vmatpush2.msra.mxu0 0.0
    %1761 = vmatprep.subr.mxu0 0.0
    %1762 = vmatpush2.msra.mxu0 0.0
    %1763 = vmatprep.subr.mxu0 0.0
    %1764 = vmatpush2.msra.mxu0 0.0
    %1765 = vmatprep.subr.mxu0 0.0
    %1766 = vmatpush2.msra.mxu0 0.0
    %1767 = vmatprep.subr.mxu0 0.0
    %1768 = vmatpush2.msra.mxu0 0.0
    %1769 = vmatprep.subr.mxu0 0.0
    %1770 = vmatpush2.msra.mxu0 0.0
    %1771 = vmatprep.subr.mxu0 0.0
    %1772 = vmatpush2.msra.mxu0 0.0
    %1773 = vmatprep.subr.mxu0 0.0
    %1774 = vmatpush2.msra.mxu0 0.0
    %1775 = vmatprep.mubr.f32.mxu0 0.0
    %1776 = vmatmul.mubr.f32.gmra.mxu0 %v1709
    %v1777 = vpop.f32.mrf.mxu0
    %v1778 = vadd.f32 0.0, %v1777
    %v1779 = vpop.f32.mrf.mxu0
    %1780 = vdwg.mxu0
    %v1781 = vadd.f32 %v1707, %v1778
    %v1782 = vrot.slane %v1116, 1
    %v1783 = vsel %vm1119, %v1782, 0
    %1785 = vmatprep.subr.mxu0 0.0
    %1786 = vmatpush1.msra.mxu0 0.0
    %1787 = vmatprep.subr.mxu0 0.0
    %1788 = vmatpush1.msra.mxu0 0.0
    %1789 = vmatprep.subr.mxu0 0.0
    %1790 = vmatpush1.msra.mxu0 0.0
    %1791 = vmatprep.subr.mxu0 0.0
    %1792 = vmatpush1.msra.mxu0 0.0
    %1793 = vmatprep.subr.mxu0 0.0
    %1794 = vmatpush1.msra.mxu0 0.0
    %1795 = vmatprep.subr.mxu0 0.0
    %1796 = vmatpush1.msra.mxu0 0.0
    %1797 = vmatprep.subr.mxu0 0.0
    %1798 = vmatpush1.msra.mxu0 0.0
    %1799 = vmatprep.subr.mxu0 0.0
    %1800 = vmatpush1.msra.mxu0 0.0
    %1801 = vmatprep.subr.mxu0 0.0
    %1802 = vmatpush1.msra.mxu0 0.0
    %1803 = vmatprep.subr.mxu0 0.0
    %1804 = vmatpush1.msra.mxu0 0.0
    %1805 = vmatprep.subr.mxu0 0.0
    %1806 = vmatpush1.msra.mxu0 0.0
    %1807 = vmatprep.subr.mxu0 0.0
    %1808 = vmatpush1.msra.mxu0 0.0
    %1809 = vmatprep.subr.mxu0 0.0
    %1810 = vmatpush1.msra.mxu0 %v1108
    %1811 = vmatprep.subr.mxu0 0.0
    %1812 = vmatpush1.msra.mxu0 %v1092
    %1813 = vmatprep.subr.mxu0 0.0
    %1814 = vmatpush1.msra.mxu0 %v1076
    %1815 = vmatprep.subr.mxu0 0.0
    %1816 = vmatpush1.msra.mxu0 %v1060
    %1817 = vmatprep.subr.mxu0 0.0
    %1818 = vmatpush2.msra.mxu0 0.0
    %1819 = vmatprep.subr.mxu0 0.0
    %1820 = vmatpush2.msra.mxu0 0.0
    %1821 = vmatprep.subr.mxu0 0.0
    %1822 = vmatpush2.msra.mxu0 0.0
    %1823 = vmatprep.subr.mxu0 0.0
    %1824 = vmatpush2.msra.mxu0 0.0
    %1825 = vmatprep.subr.mxu0 0.0
    %1826 = vmatpush2.msra.mxu0 0.0
    %1827 = vmatprep.subr.mxu0 0.0
    %1828 = vmatpush2.msra.mxu0 0.0
    %1829 = vmatprep.subr.mxu0 0.0
    %1830 = vmatpush2.msra.mxu0 0.0
    %1831 = vmatprep.subr.mxu0 0.0
    %1832 = vmatpush2.msra.mxu0 0.0
    %1833 = vmatprep.subr.mxu0 0.0
    %1834 = vmatpush2.msra.mxu0 0.0
    %1835 = vmatprep.subr.mxu0 0.0
    %1836 = vmatpush2.msra.mxu0 0.0
    %1837 = vmatprep.subr.mxu0 0.0
    %1838 = vmatpush2.msra.mxu0 0.0
    %1839 = vmatprep.subr.mxu0 0.0
    %1840 = vmatpush2.msra.mxu0 0.0
    %1841 = vmatprep.subr.mxu0 0.0
    %1842 = vmatpush2.msra.mxu0 0.0
    %1843 = vmatprep.subr.mxu0 0.0
    %1844 = vmatpush2.msra.mxu0 0.0
    %1845 = vmatprep.subr.mxu0 0.0
    %1846 = vmatpush2.msra.mxu0 0.0
    %1847 = vmatprep.subr.mxu0 0.0
    %1848 = vmatpush2.msra.mxu0 0.0
    %1849 = vmatprep.mubr.f32.mxu0 0.0
    %1850 = vmatmul.mubr.f32.gmra.mxu0 %v1783
    %v1851 = vpop.f32.mrf.mxu0
    %v1852 = vadd.f32 0.0, %v1851
    %v1853 = vpop.f32.mrf.mxu0
    %1854 = vdwg.mxu0
    %v1855 = vadd.f32 %v1781, %v1852
    %v1856 = vrot.slane %v1116, 2
    %v1857 = vsel %vm1119, %v1856, 0
    %1859 = vmatprep.subr.mxu0 0.0
    %1860 = vmatpush1.msra.mxu0 0.0
    %1861 = vmatprep.subr.mxu0 0.0
    %1862 = vmatpush1.msra.mxu0 0.0
    %1863 = vmatprep.subr.mxu0 0.0
    %1864 = vmatpush1.msra.mxu0 0.0
    %1865 = vmatprep.subr.mxu0 0.0
    %1866 = vmatpush1.msra.mxu0 0.0
    %1867 = vmatprep.subr.mxu0 0.0
    %1868 = vmatpush1.msra.mxu0 0.0
    %1869 = vmatprep.subr.mxu0 0.0
    %1870 = vmatpush1.msra.mxu0 0.0
    %1871 = vmatprep.subr.mxu0 0.0
    %1872 = vmatpush1.msra.mxu0 0.0
    %1873 = vmatprep.subr.mxu0 0.0
    %1874 = vmatpush1.msra.mxu0 0.0
    %1875 = vmatprep.subr.mxu0 0.0
    %1876 = vmatpush1.msra.mxu0 0.0
    %1877 = vmatprep.subr.mxu0 0.0
    %1878 = vmatpush1.msra.mxu0 0.0
    %1879 = vmatprep.subr.mxu0 0.0
    %1880 = vmatpush1.msra.mxu0 0.0
    %1881 = vmatprep.subr.mxu0 0.0
    %1882 = vmatpush1.msra.mxu0 0.0
    %1883 = vmatprep.subr.mxu0 0.0
    %1884 = vmatpush1.msra.mxu0 %v1109
    %1885 = vmatprep.subr.mxu0 0.0
    %1886 = vmatpush1.msra.mxu0 %v1093
    %1887 = vmatprep.subr.mxu0 0.0
    %1888 = vmatpush1.msra.mxu0 %v1077
    %1889 = vmatprep.subr.mxu0 0.0
    %1890 = vmatpush1.msra.mxu0 %v1061
    %1891 = vmatprep.subr.mxu0 0.0
    %1892 = vmatpush2.msra.mxu0 0.0
    %1893 = vmatprep.subr.mxu0 0.0
    %1894 = vmatpush2.msra.mxu0 0.0
    %1895 = vmatprep.subr.mxu0 0.0
    %1896 = vmatpush2.msra.mxu0 0.0
    %1897 = vmatprep.subr.mxu0 0.0
    %1898 = vmatpush2.msra.mxu0 0.0
    %1899 = vmatprep.subr.mxu0 0.0
    %1900 = vmatpush2.msra.mxu0 0.0
    %1901 = vmatprep.subr.mxu0 0.0
    %1902 = vmatpush2.msra.mxu0 0.0
    %1903 = vmatprep.subr.mxu0 0.0
    %1904 = vmatpush2.msra.mxu0 0.0
    %1905 = vmatprep.subr.mxu0 0.0
    %1906 = vmatpush2.msra.mxu0 0.0
    %1907 = vmatprep.subr.mxu0 0.0
    %1908 = vmatpush2.msra.mxu0 0.0
    %1909 = vmatprep.subr.mxu0 0.0
    %1910 = vmatpush2.msra.mxu0 0.0
    %1911 = vmatprep.subr.mxu0 0.0
    %1912 = vmatpush2.msra.mxu0 0.0
    %1913 = vmatprep.subr.mxu0 0.0
    %1914 = vmatpush2.msra.mxu0 0.0
    %1915 = vmatprep.subr.mxu0 0.0
    %1916 = vmatpush2.msra.mxu0 0.0
    %1917 = vmatprep.subr.mxu0 0.0
    %1918 = vmatpush2.msra.mxu0 0.0
    %1919 = vmatprep.subr.mxu0 0.0
    %1920 = vmatpush2.msra.mxu0 0.0
    %1921 = vmatprep.subr.mxu0 0.0
    %1922 = vmatpush2.msra.mxu0 0.0
    %1923 = vmatprep.mubr.f32.mxu0 0.0
    %1924 = vmatmul.mubr.f32.gmra.mxu0 %v1857
    %v1925 = vpop.f32.mrf.mxu0
    %v1926 = vadd.f32 0.0, %v1925
    %v1927 = vpop.f32.mrf.mxu0
    %1928 = vdwg.mxu0
    %v1929 = vadd.f32 %v1855, %v1926
    %v1930 = vrot.slane %v1116, 3
    %v1931 = vsel %vm1119, %v1930, 0
    %1933 = vmatprep.subr.mxu0 0.0
    %1934 = vmatpush1.msra.mxu0 0.0
    %1935 = vmatprep.subr.mxu0 0.0
    %1936 = vmatpush1.msra.mxu0 0.0
    %1937 = vmatprep.subr.mxu0 0.0
    %1938 = vmatpush1.msra.mxu0 0.0
    %1939 = vmatprep.subr.mxu0 0.0
    %1940 = vmatpush1.msra.mxu0 0.0
    %1941 = vmatprep.subr.mxu0 0.0
    %1942 = vmatpush1.msra.mxu0 0.0
    %1943 = vmatprep.subr.mxu0 0.0
    %1944 = vmatpush1.msra.mxu0 0.0
    %1945 = vmatprep.subr.mxu0 0.0
    %1946 = vmatpush1.msra.mxu0 0.0
    %1947 = vmatprep.subr.mxu0 0.0
    %1948 = vmatpush1.msra.mxu0 0.0
    %1949 = vmatprep.subr.mxu0 0.0
    %1950 = vmatpush1.msra.mxu0 0.0
    %1951 = vmatprep.subr.mxu0 0.0
    %1952 = vmatpush1.msra.mxu0 0.0
    %1953 = vmatprep.subr.mxu0 0.0
    %1954 = vmatpush1.msra.mxu0 0.0
    %1955 = vmatprep.subr.mxu0 0.0
    %1956 = vmatpush1.msra.mxu0 0.0
    %1957 = vmatprep.subr.mxu0 0.0
    %1958 = vmatpush1.msra.mxu0 %v1110
    %1959 = vmatprep.subr.mxu0 0.0
    %1960 = vmatpush1.msra.mxu0 %v1094
    %1961 = vmatprep.subr.mxu0 0.0
    %1962 = vmatpush1.msra.mxu0 %v1078
    %1963 = vmatprep.subr.mxu0 0.0
    %1964 = vmatpush1.msra.mxu0 %v1062
    %1965 = vmatprep.subr.mxu0 0.0
    %1966 = vmatpush2.msra.mxu0 0.0
    %1967 = vmatprep.subr.mxu0 0.0
    %1968 = vmatpush2.msra.mxu0 0.0
    %1969 = vmatprep.subr.mxu0 0.0
    %1970 = vmatpush2.msra.mxu0 0.0
    %1971 = vmatprep.subr.mxu0 0.0
    %1972 = vmatpush2.msra.mxu0 0.0
    %1973 = vmatprep.subr.mxu0 0.0
    %1974 = vmatpush2.msra.mxu0 0.0
    %1975 = vmatprep.subr.mxu0 0.0
    %1976 = vmatpush2.msra.mxu0 0.0
    %1977 = vmatprep.subr.mxu0 0.0
    %1978 = vmatpush2.msra.mxu0 0.0
    %1979 = vmatprep.subr.mxu0 0.0
    %1980 = vmatpush2.msra.mxu0 0.0
    %1981 = vmatprep.subr.mxu0 0.0
    %1982 = vmatpush2.msra.mxu0 0.0
    %1983 = vmatprep.subr.mxu0 0.0
    %1984 = vmatpush2.msra.mxu0 0.0
    %1985 = vmatprep.subr.mxu0 0.0
    %1986 = vmatpush2.msra.mxu0 0.0
    %1987 = vmatprep.subr.mxu0 0.0
    %1988 = vmatpush2.msra.mxu0 0.0
    %1989 = vmatprep.subr.mxu0 0.0
    %1990 = vmatpush2.msra.mxu0 0.0
    %1991 = vmatprep.subr.mxu0 0.0
    %1992 = vmatpush2.msra.mxu0 0.0
    %1993 = vmatprep.subr.mxu0 0.0
    %1994 = vmatpush2.msra.mxu0 0.0
    %1995 = vmatprep.subr.mxu0 0.0
    %1996 = vmatpush2.msra.mxu0 0.0
    %1997 = vmatprep.mubr.f32.mxu0 0.0
    %1998 = vmatmul.mubr.f32.gmra.mxu0 %v1931
    %v1999 = vpop.f32.mrf.mxu0
    %v2000 = vadd.f32 0.0, %v1999
    %v2001 = vpop.f32.mrf.mxu0
    %2002 = vdwg.mxu0
    %v2003 = vadd.f32 %v1929, %v2000
    %v2004 = vrot.slane %v1116, 4
    %v2005 = vsel %vm1119, %v2004, 0
    %2007 = vmatprep.subr.mxu0 0.0
    %2008 = vmatpush1.msra.mxu0 0.0
    %2009 = vmatprep.subr.mxu0 0.0
    %2010 = vmatpush1.msra.mxu0 0.0
    %2011 = vmatprep.subr.mxu0 0.0
    %2012 = vmatpush1.msra.mxu0 0.0
    %2013 = vmatprep.subr.mxu0 0.0
    %2014 = vmatpush1.msra.mxu0 0.0
    %2015 = vmatprep.subr.mxu0 0.0
    %2016 = vmatpush1.msra.mxu0 0.0
    %2017 = vmatprep.subr.mxu0 0.0
    %2018 = vmatpush1.msra.mxu0 0.0
    %2019 = vmatprep.subr.mxu0 0.0
    %2020 = vmatpush1.msra.mxu0 0.0
    %2021 = vmatprep.subr.mxu0 0.0
    %2022 = vmatpush1.msra.mxu0 0.0
    %2023 = vmatprep.subr.mxu0 0.0
    %2024 = vmatpush1.msra.mxu0 0.0
    %2025 = vmatprep.subr.mxu0 0.0
    %2026 = vmatpush1.msra.mxu0 0.0
    %2027 = vmatprep.subr.mxu0 0.0
    %2028 = vmatpush1.msra.mxu0 0.0
    %2029 = vmatprep.subr.mxu0 0.0
    %2030 = vmatpush1.msra.mxu0 0.0
    %2031 = vmatprep.subr.mxu0 0.0
    %2032 = vmatpush1.msra.mxu0 %v1111
    %2033 = vmatprep.subr.mxu0 0.0
    %2034 = vmatpush1.msra.mxu0 %v1095
    %2035 = vmatprep.subr.mxu0 0.0
    %2036 = vmatpush1.msra.mxu0 %v1079
    %2037 = vmatprep.subr.mxu0 0.0
    %2038 = vmatpush1.msra.mxu0 %v1063
    %2039 = vmatprep.subr.mxu0 0.0
    %2040 = vmatpush2.msra.mxu0 0.0
    %2041 = vmatprep.subr.mxu0 0.0
    %2042 = vmatpush2.msra.mxu0 0.0
    %2043 = vmatprep.subr.mxu0 0.0
    %2044 = vmatpush2.msra.mxu0 0.0
    %2045 = vmatprep.subr.mxu0 0.0
    %2046 = vmatpush2.msra.mxu0 0.0
    %2047 = vmatprep.subr.mxu0 0.0
    %2048 = vmatpush2.msra.mxu0 0.0
    %2049 = vmatprep.subr.mxu0 0.0
    %2050 = vmatpush2.msra.mxu0 0.0
    %2051 = vmatprep.subr.mxu0 0.0
    %2052 = vmatpush2.msra.mxu0 0.0
    %2053 = vmatprep.subr.mxu0 0.0
    %2054 = vmatpush2.msra.mxu0 0.0
    %2055 = vmatprep.subr.mxu0 0.0
    %2056 = vmatpush2.msra.mxu0 0.0
    %2057 = vmatprep.subr.mxu0 0.0
    %2058 = vmatpush2.msra.mxu0 0.0
    %2059 = vmatprep.subr.mxu0 0.0
    %2060 = vmatpush2.msra.mxu0 0.0
    %2061 = vmatprep.subr.mxu0 0.0
    %2062 = vmatpush2.msra.mxu0 0.0
    %2063 = vmatprep.subr.mxu0 0.0
    %2064 = vmatpush2.msra.mxu0 0.0
    %2065 = vmatprep.subr.mxu0 0.0
    %2066 = vmatpush2.msra.mxu0 0.0
    %2067 = vmatprep.subr.mxu0 0.0
    %2068 = vmatpush2.msra.mxu0 0.0
    %2069 = vmatprep.subr.mxu0 0.0
    %2070 = vmatpush2.msra.mxu0 0.0
    %2071 = vmatprep.mubr.f32.mxu0 0.0
    %2072 = vmatmul.mubr.f32.gmra.mxu0 %v2005
    %v2073 = vpop.f32.mrf.mxu0
    %v2074 = vadd.f32 0.0, %v2073
    %v2075 = vpop.f32.mrf.mxu0
    %2076 = vdwg.mxu0
    %v2077 = vadd.f32 %v2003, %v2074
    %v2078 = vrot.slane %v1116, 5
    %v2079 = vsel %vm1119, %v2078, 0
    %2081 = vmatprep.subr.mxu0 0.0
    %2082 = vmatpush1.msra.mxu0 0.0
    %2083 = vmatprep.subr.mxu0 0.0
    %2084 = vmatpush1.msra.mxu0 0.0
    %2085 = vmatprep.subr.mxu0 0.0
    %2086 = vmatpush1.msra.mxu0 0.0
    %2087 = vmatprep.subr.mxu0 0.0
    %2088 = vmatpush1.msra.mxu0 0.0
    %2089 = vmatprep.subr.mxu0 0.0
    %2090 = vmatpush1.msra.mxu0 0.0
    %2091 = vmatprep.subr.mxu0 0.0
    %2092 = vmatpush1.msra.mxu0 0.0
    %2093 = vmatprep.subr.mxu0 0.0
    %2094 = vmatpush1.msra.mxu0 0.0
    %2095 = vmatprep.subr.mxu0 0.0
    %2096 = vmatpush1.msra.mxu0 0.0
    %2097 = vmatprep.subr.mxu0 0.0
    %2098 = vmatpush1.msra.mxu0 0.0
    %2099 = vmatprep.subr.mxu0 0.0
    %2100 = vmatpush1.msra.mxu0 0.0
    %2101 = vmatprep.subr.mxu0 0.0
    %2102 = vmatpush1.msra.mxu0 0.0
    %2103 = vmatprep.subr.mxu0 0.0
    %2104 = vmatpush1.msra.mxu0 0.0
    %2105 = vmatprep.subr.mxu0 0.0
    %2106 = vmatpush1.msra.mxu0 %v1112
    %2107 = vmatprep.subr.mxu0 0.0
    %2108 = vmatpush1.msra.mxu0 %v1096
    %2109 = vmatprep.subr.mxu0 0.0
    %2110 = vmatpush1.msra.mxu0 %v1080
    %2111 = vmatprep.subr.mxu0 0.0
    %2112 = vmatpush1.msra.mxu0 %v1064
    %2113 = vmatprep.subr.mxu0 0.0
    %2114 = vmatpush2.msra.mxu0 0.0
    %2115 = vmatprep.subr.mxu0 0.0
    %2116 = vmatpush2.msra.mxu0 0.0
    %2117 = vmatprep.subr.mxu0 0.0
    %2118 = vmatpush2.msra.mxu0 0.0
    %2119 = vmatprep.subr.mxu0 0.0
    %2120 = vmatpush2.msra.mxu0 0.0
    %2121 = vmatprep.subr.mxu0 0.0
    %2122 = vmatpush2.msra.mxu0 0.0
    %2123 = vmatprep.subr.mxu0 0.0
    %2124 = vmatpush2.msra.mxu0 0.0
    %2125 = vmatprep.subr.mxu0 0.0
    %2126 = vmatpush2.msra.mxu0 0.0
    %2127 = vmatprep.subr.mxu0 0.0
    %2128 = vmatpush2.msra.mxu0 0.0
    %2129 = vmatprep.subr.mxu0 0.0
    %2130 = vmatpush2.msra.mxu0 0.0
    %2131 = vmatprep.subr.mxu0 0.0
    %2132 = vmatpush2.msra.mxu0 0.0
    %2133 = vmatprep.subr.mxu0 0.0
    %2134 = vmatpush2.msra.mxu0 0.0
    %2135 = vmatprep.subr.mxu0 0.0
    %2136 = vmatpush2.msra.mxu0 0.0
    %2137 = vmatprep.subr.mxu0 0.0
    %2138 = vmatpush2.msra.mxu0 0.0
    %2139 = vmatprep.subr.mxu0 0.0
    %2140 = vmatpush2.msra.mxu0 0.0
    %2141 = vmatprep.subr.mxu0 0.0
    %2142 = vmatpush2.msra.mxu0 0.0
    %2143 = vmatprep.subr.mxu0 0.0
    %2144 = vmatpush2.msra.mxu0 0.0
    %2145 = vmatprep.mubr.f32.mxu0 0.0
    %2146 = vmatmul.mubr.f32.gmra.mxu0 %v2079
    %v2147 = vpop.f32.mrf.mxu0
    %v2148 = vadd.f32 0.0, %v2147
    %v2149 = vpop.f32.mrf.mxu0
    %2150 = vdwg.mxu0
    %v2151 = vadd.f32 %v2077, %v2148
    %v2152 = vrot.slane %v1116, 6
    %v2153 = vsel %vm1119, %v2152, 0
    %2155 = vmatprep.subr.mxu0 0.0
    %2156 = vmatpush1.msra.mxu0 0.0
    %2157 = vmatprep.subr.mxu0 0.0
    %2158 = vmatpush1.msra.mxu0 0.0
    %2159 = vmatprep.subr.mxu0 0.0
    %2160 = vmatpush1.msra.mxu0 0.0
    %2161 = vmatprep.subr.mxu0 0.0
    %2162 = vmatpush1.msra.mxu0 0.0
    %2163 = vmatprep.subr.mxu0 0.0
    %2164 = vmatpush1.msra.mxu0 0.0
    %2165 = vmatprep.subr.mxu0 0.0
    %2166 = vmatpush1.msra.mxu0 0.0
    %2167 = vmatprep.subr.mxu0 0.0
    %2168 = vmatpush1.msra.mxu0 0.0
    %2169 = vmatprep.subr.mxu0 0.0
    %2170 = vmatpush1.msra.mxu0 0.0
    %2171 = vmatprep.subr.mxu0 0.0
    %2172 = vmatpush1.msra.mxu0 0.0
    %2173 = vmatprep.subr.mxu0 0.0
    %2174 = vmatpush1.msra.mxu0 0.0
    %2175 = vmatprep.subr.mxu0 0.0
    %2176 = vmatpush1.msra.mxu0 0.0
    %2177 = vmatprep.subr.mxu0 0.0
    %2178 = vmatpush1.msra.mxu0 0.0
    %2179 = vmatprep.subr.mxu0 0.0
    %2180 = vmatpush1.msra.mxu0 %v1113
    %2181 = vmatprep.subr.mxu0 0.0
    %2182 = vmatpush1.msra.mxu0 %v1097
    %2183 = vmatprep.subr.mxu0 0.0
    %2184 = vmatpush1.msra.mxu0 %v1081
    %2185 = vmatprep.subr.mxu0 0.0
    %2186 = vmatpush1.msra.mxu0 %v1065
    %2187 = vmatprep.subr.mxu0 0.0
    %2188 = vmatpush2.msra.mxu0 0.0
    %2189 = vmatprep.subr.mxu0 0.0
    %2190 = vmatpush2.msra.mxu0 0.0
    %2191 = vmatprep.subr.mxu0 0.0
    %2192 = vmatpush2.msra.mxu0 0.0
    %2193 = vmatprep.subr.mxu0 0.0
    %2194 = vmatpush2.msra.mxu0 0.0
    %2195 = vmatprep.subr.mxu0 0.0
    %2196 = vmatpush2.msra.mxu0 0.0
    %2197 = vmatprep.subr.mxu0 0.0
    %2198 = vmatpush2.msra.mxu0 0.0
    %2199 = vmatprep.subr.mxu0 0.0
    %2200 = vmatpush2.msra.mxu0 0.0
    %2201 = vmatprep.subr.mxu0 0.0
    %2202 = vmatpush2.msra.mxu0 0.0
    %2203 = vmatprep.subr.mxu0 0.0
    %2204 = vmatpush2.msra.mxu0 0.0
    %2205 = vmatprep.subr.mxu0 0.0
    %2206 = vmatpush2.msra.mxu0 0.0
    %2207 = vmatprep.subr.mxu0 0.0
    %2208 = vmatpush2.msra.mxu0 0.0
    %2209 = vmatprep.subr.mxu0 0.0
    %2210 = vmatpush2.msra.mxu0 0.0
    %2211 = vmatprep.subr.mxu0 0.0
    %2212 = vmatpush2.msra.mxu0 0.0
    %2213 = vmatprep.subr.mxu0 0.0
    %2214 = vmatpush2.msra.mxu0 0.0
    %2215 = vmatprep.subr.mxu0 0.0
    %2216 = vmatpush2.msra.mxu0 0.0
    %2217 = vmatprep.subr.mxu0 0.0
    %2218 = vmatpush2.msra.mxu0 0.0
    %2219 = vmatprep.mubr.f32.mxu0 0.0
    %2220 = vmatmul.mubr.f32.gmra.mxu0 %v2153
    %v2221 = vpop.f32.mrf.mxu0
    %v2222 = vadd.f32 0.0, %v2221
    %v2223 = vpop.f32.mrf.mxu0
    %2224 = vdwg.mxu0
    %v2225 = vadd.f32 %v2151, %v2222
    %v2226 = vrot.slane %v1116, 7
    %v2227 = vsel %vm1119, %v2226, 0
    %2229 = vmatprep.subr.mxu0 0.0
    %2230 = vmatpush1.msra.mxu0 0.0
    %2231 = vmatprep.subr.mxu0 0.0
    %2232 = vmatpush1.msra.mxu0 0.0
    %2233 = vmatprep.subr.mxu0 0.0
    %2234 = vmatpush1.msra.mxu0 0.0
    %2235 = vmatprep.subr.mxu0 0.0
    %2236 = vmatpush1.msra.mxu0 0.0
    %2237 = vmatprep.subr.mxu0 0.0
    %2238 = vmatpush1.msra.mxu0 0.0
    %2239 = vmatprep.subr.mxu0 0.0
    %2240 = vmatpush1.msra.mxu0 0.0
    %2241 = vmatprep.subr.mxu0 0.0
    %2242 = vmatpush1.msra.mxu0 0.0
    %2243 = vmatprep.subr.mxu0 0.0
    %2244 = vmatpush1.msra.mxu0 0.0
    %2245 = vmatprep.subr.mxu0 0.0
    %2246 = vmatpush1.msra.mxu0 0.0
    %2247 = vmatprep.subr.mxu0 0.0
    %2248 = vmatpush1.msra.mxu0 0.0
    %2249 = vmatprep.subr.mxu0 0.0
    %2250 = vmatpush1.msra.mxu0 0.0
    %2251 = vmatprep.subr.mxu0 0.0
    %2252 = vmatpush1.msra.mxu0 0.0
    %2253 = vmatprep.subr.mxu0 0.0
    %2254 = vmatpush1.msra.mxu0 %v1114
    %2255 = vmatprep.subr.mxu0 0.0
    %2256 = vmatpush1.msra.mxu0 %v1098
    %2257 = vmatprep.subr.mxu0 0.0
    %2258 = vmatpush1.msra.mxu0 %v1082
    %2259 = vmatprep.subr.mxu0 0.0
    %2260 = vmatpush1.msra.mxu0 %v1066
    %2261 = vmatprep.subr.mxu0 0.0
    %2262 = vmatpush2.msra.mxu0 0.0
    %2263 = vmatprep.subr.mxu0 0.0
    %2264 = vmatpush2.msra.mxu0 0.0
    %2265 = vmatprep.subr.mxu0 0.0
    %2266 = vmatpush2.msra.mxu0 0.0
    %2267 = vmatprep.subr.mxu0 0.0
    %2268 = vmatpush2.msra.mxu0 0.0
    %2269 = vmatprep.subr.mxu0 0.0
    %2270 = vmatpush2.msra.mxu0 0.0
    %2271 = vmatprep.subr.mxu0 0.0
    %2272 = vmatpush2.msra.mxu0 0.0
    %2273 = vmatprep.subr.mxu0 0.0
    %2274 = vmatpush2.msra.mxu0 0.0
    %2275 = vmatprep.subr.mxu0 0.0
    %2276 = vmatpush2.msra.mxu0 0.0
    %2277 = vmatprep.subr.mxu0 0.0
    %2278 = vmatpush2.msra.mxu0 0.0
    %2279 = vmatprep.subr.mxu0 0.0
    %2280 = vmatpush2.msra.mxu0 0.0
    %2281 = vmatprep.subr.mxu0 0.0
    %2282 = vmatpush2.msra.mxu0 0.0
    %2283 = vmatprep.subr.mxu0 0.0
    %2284 = vmatpush2.msra.mxu0 0.0
    %2285 = vmatprep.subr.mxu0 0.0
    %2286 = vmatpush2.msra.mxu0 0.0
    %2287 = vmatprep.subr.mxu0 0.0
    %2288 = vmatpush2.msra.mxu0 0.0
    %2289 = vmatprep.subr.mxu0 0.0
    %2290 = vmatpush2.msra.mxu0 0.0
    %2291 = vmatprep.subr.mxu0 0.0
    %2292 = vmatpush2.msra.mxu0 0.0
    %2293 = vmatprep.mubr.f32.mxu0 0.0
    %2294 = vmatmul.mubr.f32.gmra.mxu0 %v2227
    %v2295 = vpop.f32.mrf.mxu0
    %v2296 = vadd.f32 0.0, %v2295
    %v2297 = vpop.f32.mrf.mxu0
    %2298 = vdwg.mxu0
    %v2299 = vadd.f32 %v2225, %v2296
    %s2300 = sld [smem:[#allocation2]]
    %v2301 = vstv %s2300
    %v2302 = vadd.f32 %v2299, %v2301
    %2303 = vst [vmem:[#allocation6] sm:$0x1] %v2302
    // Predicated region
    $region22: #{tpu_custom_call.1} parent=1 // pred_check
      _
    $region23: #{tpu_custom_call.1} parent=1 // pred_check_branch
      %2305 = sbr.rel (0) target = $region25
    $region24: #{tpu_custom_call.1} parent=1 // pred_region
      %s2307 = ssub.s32 16, 16
      %2308 = vsyncadd [#allocation5], %s2307
      %s2310 = sshll.u32 [#allocation6], 4
      %s2311 = int_to_ptr.vmem [resolvable:$true] %s2310
      %2313 = dma.vmem_to_hbm [thread:$0]  %s2311, 16, %s4, [#allocation5]
    $region25: #{tpu_custom_call.1} parent=1 // pred_fallthru
      _
    // Predicated region
    $region26: #{tpu_custom_call.1} parent=1 // pred_check
      _
    $region27: #{tpu_custom_call.1} parent=1 // pred_check_branch
      %2315 = sbr.rel (0) target = $region29
    $region28: #{tpu_custom_call.1} parent=1 // pred_region
      %2316 = dma.done [#allocation5], 16
    $region29: #{tpu_custom_call.1} parent=1 // pred_fallthru
      _
    %2317 = vsyncpa [#allocation4], 1
    %2318 = vsyncpa [#allocation5], 1

</llo_original>
